<compile_context>
chip_gen: v6e
topology: v6e:2x2x1
jax: 0.10.0
libtpu: 0.0.40
codegen_flags: <defaults>
</compile_context>

<pallas_src>
import math

import jax
import jax.numpy as jnp
from jax.experimental import pallas as pl
from jax.experimental.pallas import tpu as pltpu


def _leaky_relu(v, slope=0.2):
    return jnp.where(v > 0, v, slope * v)


# --------------------------------------------------------------------------- kernel
def binary_options_kernel(x_ref, w_ref, b_ref, o_ref):
    """Fused 5-matmul forward.

    x_ref : (tb, in_feat)     storage dtype (f32 or bf16)
    w_ref : (5, K, N)         zero-padded fused weights, storage dtype
    b_ref : (5, 1, N)         zero-padded fused biases, f32
    o_ref : (tb, out_size)    f32
    """
    cdt = w_ref.dtype
    N = w_ref.shape[2]

    def wmat(layer, fan_in):
        w = w_ref[layer]                                   # (K, N), static index
        return w if fan_in == w.shape[0] else w[:fan_in, :]

    # layer 0: price + indicator branches as one block-diagonal matmul + LeakyReLU
    h = jnp.dot(x_ref[...], wmat(0, x_ref.shape[1]),
                preferred_element_type=jnp.float32) + b_ref[0]
    h = _leaky_relu(h)

    # layer 1: branchBN ∘ value-proj ∘ layer1 ∘ bn1 (all folded) + LeakyReLU
    # layer 2: layer2 ∘ bn2 (folded) + LeakyReLU   (dropout = identity)
    # layer 3: regime ∘ regime_bn (folded) + LeakyReLU
    for layer in (1, 2, 3):
        h = jnp.dot(h.astype(cdt), wmat(layer, N),
                    preferred_element_type=jnp.float32) + b_ref[layer]
        h = _leaky_relu(h)

    # layer 4: layer3 (logits) — store only the real output columns
    out = jnp.dot(h.astype(cdt), wmat(4, N),
                  preferred_element_type=jnp.float32) + b_ref[4]
    o_ref[...] = out[:, : o_ref.shape[1]].astype(o_ref.dtype)


# --------------------------------------------------------------------------- wrapper
def binary_options_forward(x, w_slab, b_slab, output_size, *, block_b=None):
    """Runs the fused forward pass.  Batch axis is the single ("parallel") grid axis.

    block_b=None  -> as few grid steps as possible (best on 1-TC v5e/v6e).
    On v7x, pass block_b = round8(ceil(B/2)) so the two TensorCores each take
    half the batch.
    """
    B, in_feat = x.shape
    n_layers, K, N = w_slab.shape
    assert in_feat <= K

    # bf16 (or f32) storage for the dominant HBM read; matmuls accumulate in f32.
    x = x.astype(w_slab.dtype)

    # Tile selection: per grid step costs ~0.35 us of fixed overhead which dwarfs
    # the compute here, so prefer a single step.  VMEM only becomes a concern
    # beyond ~100K rows per block at f32; cap well below that.
    if block_b is None or block_b >= B:
        tb = B
    else:
        tb = max(8, (min(block_b, B) // 8) * 8)   # (8,128) rule: non-full dim % 8 == 0
    if B > 4096 and tb == B:
        tb = 2048
    assert tb == B or tb % 8 == 0
    grid = (pl.cdiv(B, tb),)

    itemsize = jnp.dtype(w_slab.dtype).itemsize
    flops = 2 * B * n_layers * K * N
    bytes_accessed = (B * in_feat * itemsize + B * output_size * 4
                      + w_slab.size * itemsize + b_slab.size * 4)

    return pl.pallas_call(
        binary_options_kernel,
        out_shape=jax.ShapeDtypeStruct((B, output_size), jnp.float32),
        grid=grid,
        in_specs=[
            pl.BlockSpec((tb, in_feat), lambda i: (i, 0)),
            pl.BlockSpec(w_slab.shape, lambda i: (0, 0, 0)),   # VMEM-resident
            pl.BlockSpec(b_slab.shape, lambda i: (0, 0, 0)),   # VMEM-resident
        ],
        out_specs=pl.BlockSpec((tb, output_size), lambda i: (i, 0)),
        compiler_params=pltpu.CompilerParams(
            dimension_semantics=("parallel",)),
        cost_estimate=pl.CostEstimate(
            flops=flops, transcendentals=0, bytes_accessed=bytes_accessed),
    )(x, w_slab, b_slab)


# --------------------------------------------------------------------------- params
def init_params(key, input_size, hidden_size, output_size):
    """Raw parameters matching the torch module's shapes (weights pre-transposed to
    (in, out)).  BatchNorm is given as eval-mode scale/shift (fresh init stats)."""
    mid = input_size // 2
    rest = input_size - mid
    h2 = hidden_size // 2
    h4 = hidden_size // 4
    eps = 1e-5

    def linear(key, fan_in, fan_out):
        kw, kb = jax.random.split(key)
        w = jax.random.normal(kw, (fan_in, fan_out), jnp.float32) * 0.1
        b = jax.random.normal(kb, (1, fan_out), jnp.float32) * 0.1
        return w, b

    def bn_affine(num_feat):
        # fresh BatchNorm1d eval mode: gamma=1, beta=0, running mean=0, var=1
        # (for a trained model: scale = gamma/sqrt(var+eps), shift = beta - mean*scale)
        scale = jnp.full((1, num_feat), 1.0 / math.sqrt(1.0 + eps), jnp.float32)
        shift = jnp.zeros((1, num_feat), jnp.float32)
        return scale, shift

    keys = jax.random.split(key, 9)
    wp, bp = linear(keys[0], mid, h2)
    bnp_s, bnp_b = bn_affine(h2)
    wi, bi = linear(keys[1], rest, h2)
    bni_s, bni_b = bn_affine(h2)
    wq, bq = linear(keys[2], hidden_size, hidden_size)
    wk, bk = linear(keys[3], hidden_size, hidden_size)
    wv, bv = linear(keys[4], hidden_size, hidden_size)
    w1, b1 = linear(keys[5], hidden_size, hidden_size)
    bn1_s, bn1_b = bn_affine(hidden_size)
    w2, b2 = linear(keys[6], hidden_size, h2)
    bn2_s, bn2_b = bn_affine(h2)
    wr, br = linear(keys[7], h2, h4)
    bnr_s, bnr_b = bn_affine(h4)
    w3, b3 = linear(keys[8], h4, output_size)

    return (wp, bp, bnp_s, bnp_b, wi, bi, bni_s, bni_b,
            wq, bq, wk, bk, wv, bv,
            w1, b1, bn1_s, bn1_b, w2, b2, bn2_s, bn2_b,
            wr, br, bnr_s, bnr_b, w3, b3)


def fuse_params(raw, input_size, hidden_size, output_size, dtype=jnp.bfloat16):
    """Host-side algebraic fusion (exact in eval mode) into two padded VMEM slabs."""
    (wp, bp, bnp_s, bnp_b, wi, bi, bni_s, bni_b,
     wq, bq, wk, bk, wv, bv,
     w1, b1, bn1_s, bn1_b, w2, b2, bn2_s, bn2_b,
     wr, br, bnr_s, bnr_b, w3, b3) = raw
    mid = input_size // 2
    h2 = hidden_size // 2
    h4 = hidden_size // 4
    H = hidden_size
    hp = jax.lax.Precision.HIGHEST   # host-side fusion matmuls at full f32

    # layer 0: block-diagonal branch weight -> one matmul yields [price | indicator]
    wb = jnp.zeros((input_size, H), jnp.float32)
    wb = wb.at[:mid, :h2].set(wp).at[mid:, h2:].set(wi)
    bb = jnp.concatenate([bp, bi], axis=1)                      # (1, H)

    # branch BatchNorm (applied AFTER LeakyReLU) as per-column scale/shift
    s_br = jnp.concatenate([bnp_s, bni_s], axis=1)              # (1, H)
    t_br = jnp.concatenate([bnp_b, bni_b], axis=1)              # (1, H)

    # Attention: softmax over a singleton axis -> attn == 1 -> attended == value.
    # Fold bn1 into layer1, fuse the value projection into it, then fold the
    # branch BN forward through that (purely linear) chain.
    w1f = w1 * bn1_s
    b1f = b1 * bn1_s + bn1_b
    wv1 = jnp.matmul(wv, w1f, precision=hp)                     # (H, H)
    bv1 = jnp.matmul(bv, w1f, precision=hp) + b1f               # (1, H)
    b_l1 = jnp.matmul(t_br, wv1, precision=hp) + bv1            # uses UNscaled wv1
    w_l1 = s_br.T * wv1                                         # row-scale

    # layer2 + bn2, regime + regime_bn
    w2f = w2 * bn2_s
    b2f = b2 * bn2_s + bn2_b
    wrf = wr * bnr_s
    brf = br * bnr_s + bnr_b

    # pack into one zero-padded weight slab + one bias slab
    N = max(H, output_size)
    K = max(input_size, N)
    w_slab = jnp.zeros((5, K, N), jnp.float32)
    w_slab = (w_slab.at[0, :input_size, :H].set(wb)
                     .at[1, :H, :H].set(w_l1)
                     .at[2, :H, :h2].set(w2f)
                     .at[3, :h2, :h4].set(wrf)
                     .at[4, :h4, :output_size].set(w3))
    b_slab = jnp.zeros((5, 1, N), jnp.float32)
    b_slab = (b_slab.at[0, :, :H].set(bb)
                     .at[1, :, :H].set(b_l1)
                     .at[2, :, :h2].set(b2f)
                     .at[3, :, :h4].set(brf)
                     .at[4, :, :output_size].set(b3))

    # weights in the requested storage dtype; biases stay f32 (post-accum add)
    return w_slab.astype(dtype), b_slab


# --------------------------------------------------------------------------- references
def reference_forward(x, raw, input_size, hidden_size):
    """Pure-JAX reference of the ORIGINAL (unfused) torch forward, eval mode,
    including the explicit singleton-axis softmax attention."""
    (wp, bp, bnp_s, bnp_b, wi, bi, bni_s, bni_b,
     wq, bq, wk, bk, wv, bv,
     w1, b1, bn1_s, bn1_b, w2, b2, bn2_s, bn2_b,
     wr, br, bnr_s, bnr_b, w3, b3) = raw
    hp = jax.lax.Precision.HIGHEST
    mid = input_size // 2

    pf = _leaky_relu(jnp.matmul(x[:, :mid], wp, precision=hp) + bp) * bnp_s + bnp_b
    inf = _leaky_relu(jnp.matmul(x[:, mid:], wi, precision=hp) + bi) * bni_s + bni_b
    c = jnp.concatenate([pf, inf], axis=1)

    # SelfAttention exactly as in torch (batched seq axis of length 1)
    q = jnp.matmul(c, wq, precision=hp) + bq
    k = jnp.matmul(c, wk, precision=hp) + bk
    v = jnp.matmul(c, wv, precision=hp) + bv
    scale = jnp.sqrt(jnp.float32(hidden_size))
    attn = (jnp.einsum("bh,bh->b", q, k) / scale)[:, None, None]   # (B,1,1)
    attn = jax.nn.softmax(attn, axis=2)                            # softmax over size-1 axis
    ctx = attn[:, 0, :] * v                                        # (B,1)*(B,H) == value

    h = _leaky_relu((jnp.matmul(ctx, w1, precision=hp) + b1) * bn1_s + bn1_b)
    h = _leaky_relu((jnp.matmul(h, w2, precision=hp) + b2) * bn2_s + bn2_b)
    r = _leaky_relu((jnp.matmul(h, wr, precision=hp) + br) * bnr_s + bnr_b)
    return jnp.matmul(r, w3, precision=hp) + b3


def fused_forward_jax(x, w_slab, b_slab, output_size):
    """Pure-JAX emulation of the kernel algebra (f32, HIGHEST precision) —
    used to verify the fusion is exact independently of MXU pass precision."""
    hp = jax.lax.Precision.HIGHEST
    w = w_slab.astype(jnp.float32)
    N = w.shape[2]
    h = x.astype(jnp.float32)
    h = _leaky_relu(jnp.matmul(h, w[0, :x.shape[1], :], precision=hp) + b_slab[0])
    for layer in (1, 2, 3):
        h = _leaky_relu(jnp.matmul(h, w[layer, :N, :], precision=hp) + b_slab[layer])
    out = jnp.matmul(h, w[4, :N, :], precision=hp) + b_slab[4]
    return out[:, :output_size]


# --------------------------------------------------------------------------- main
if __name__ == "__main__":
    batch, input_size, hidden_size, output_size = 256, 32, 32, 2

    key = jax.random.PRNGKey(0)
    kx, kp = jax.random.split(key)
    x = jax.random.normal(kx, (batch, input_size), jnp.float32)
    raw = init_params(kp, input_size, hidden_size, output_size)

    ref = reference_forward(x, raw, input_size, hidden_size)

    # (1) fusion algebra is exact: tight f32 check (no TPU-matmul precision slack)
    w32, b32 = fuse_params(raw, input_size, hidden_size, output_size, dtype=jnp.float32)
    fused_ref = fused_forward_jax(x, w32, b32, output_size)
    err = float(jnp.max(jnp.abs(fused_ref - ref)))
    assert jnp.allclose(fused_ref, ref, atol=1e-5, rtol=1e-5), err

    # (2) f32-storage kernel, single grid step (default, best for v5e/v6e)
    out32 = jax.block_until_ready(binary_options_forward(x, w32, b32, output_size))
    assert out32.shape == (batch, output_size), out32.shape
    err = float(jnp.max(jnp.abs(out32 - ref)))
    assert jnp.allclose(out32, ref, atol=5e-3, rtol=5e-3), err   # covers MXU f32 pass precision

    # (3) tiled grid path (2 parallel blocks, the v7x megacore configuration)
    out32t = jax.block_until_ready(
        binary_options_forward(x, w32, b32, output_size, block_b=128))
    assert jnp.allclose(out32t, out32, atol=1e-6, rtol=1e-6)

    # (4) bf16-storage kernel (default perf configuration: halves input/weight DMA)
    wbf, bbf = fuse_params(raw, input_size, hidden_size, output_size, dtype=jnp.bfloat16)
    outbf = jax.block_until_ready(binary_options_forward(x, wbf, bbf, output_size))
    err = float(jnp.max(jnp.abs(outbf - ref)))
    assert jnp.allclose(outbf, ref, atol=2e-2, rtol=2e-2), err

    print("KERNEL_OK")
</pallas_src>

<mosaic_0001>
module attributes {stable_mosaic.version = 11 : i64} {
  func.func @binary_options_kernel(%arg0: i32, %arg1: memref<256x32xf32, #tpu.memory_space<vmem>>, %arg2: memref<5x32x32xf32, #tpu.memory_space<vmem>>, %arg3: memref<5x1x32xf32, #tpu.memory_space<vmem>>, %arg4: memref<256x2xf32, #tpu.memory_space<vmem>>) attributes {dimension_semantics = [#tpu.dimension_semantics<parallel>], iteration_bounds = array<i64: 1>, scalar_prefetch = 0 : i64, scratch_operands = 0 : i64, tpu.core_type = #tpu.core_type<tc>, window_params = [{transform_indices = @transform_0, window_bounds = array<i64: 256, 32>}, {pipeline_mode = #tpu.pipeline_mode<synchronous>, transform_indices = @transform_1, window_bounds = array<i64: 5, 32, 32>}, {pipeline_mode = #tpu.pipeline_mode<synchronous>, transform_indices = @transform_2, window_bounds = array<i64: 5, 1, 32>}, {transform_indices = @transform_3, window_bounds = array<i64: 256, 2>}]} {
    %c0 = arith.constant 0 : index
    %c0_0 = arith.constant 0 : index
    %0 = vector.load %arg1[%c0, %c0_0] : memref<256x32xf32, #tpu.memory_space<vmem>>, vector<256x32xf32>
    %c0_1 = arith.constant 0 : index
    %c0_2 = arith.constant 0 : index
    %c0_3 = arith.constant 0 : index
    %1 = vector.load %arg2[%c0_1, %c0_2, %c0_3] : memref<5x32x32xf32, #tpu.memory_space<vmem>>, vector<1x32x32xf32>
    %2 = vector.shape_cast %1 : vector<1x32x32xf32> to vector<32x32xf32>
    %cst = arith.constant dense<0.000000e+00> : vector<256x32xf32>
    %3 = tpu.matmul %0, %2, %cst {dimension_numbers = #tpu.dot_dimension_numbers<[1], [0], [0], [1], [0, 0, 1, 1], [], []>} : vector<256x32xf32>, vector<32x32xf32>, vector<256x32xf32> -> vector<256x32xf32>
    %c0_4 = arith.constant 0 : index
    %c0_5 = arith.constant 0 : index
    %c0_6 = arith.constant 0 : index
    %4 = vector.load %arg3[%c0_4, %c0_5, %c0_6] : memref<5x1x32xf32, #tpu.memory_space<vmem>>, vector<1x1x32xf32>
    %5 = vector.shape_cast %4 : vector<1x1x32xf32> to vector<1x32xf32>
    %6 = vector.broadcast %5 : vector<1x32xf32> to vector<256x32xf32>
    %7 = arith.addf %3, %6 : vector<256x32xf32>
    %cst_7 = arith.constant 0.000000e+00 : f32
    %8 = vector.broadcast %cst_7 : f32 to vector<256x32xf32>
    %9 = arith.cmpf ogt, %7, %8 : vector<256x32xf32>
    %cst_8 = arith.constant 2.000000e-01 : f32
    %10 = vector.broadcast %cst_8 : f32 to vector<256x32xf32>
    %11 = arith.mulf %10, %7 : vector<256x32xf32>
    %12 = arith.select %9, %7, %11 : vector<256x32xi1>, vector<256x32xf32>
    %c1 = arith.constant 1 : index
    %c0_9 = arith.constant 0 : index
    %c0_10 = arith.constant 0 : index
    %13 = vector.load %arg2[%c1, %c0_9, %c0_10] : memref<5x32x32xf32, #tpu.memory_space<vmem>>, vector<1x32x32xf32>
    %14 = vector.shape_cast %13 : vector<1x32x32xf32> to vector<32x32xf32>
    %cst_11 = arith.constant dense<0.000000e+00> : vector<256x32xf32>
    %15 = tpu.matmul %12, %14, %cst_11 {dimension_numbers = #tpu.dot_dimension_numbers<[1], [0], [0], [1], [0, 0, 1, 1], [], []>} : vector<256x32xf32>, vector<32x32xf32>, vector<256x32xf32> -> vector<256x32xf32>
    %c1_12 = arith.constant 1 : index
    %c0_13 = arith.constant 0 : index
    %c0_14 = arith.constant 0 : index
    %16 = vector.load %arg3[%c1_12, %c0_13, %c0_14] : memref<5x1x32xf32, #tpu.memory_space<vmem>>, vector<1x1x32xf32>
    %17 = vector.shape_cast %16 : vector<1x1x32xf32> to vector<1x32xf32>
    %18 = vector.broadcast %17 : vector<1x32xf32> to vector<256x32xf32>
    %19 = arith.addf %15, %18 : vector<256x32xf32>
    %cst_15 = arith.constant 0.000000e+00 : f32
    %20 = vector.broadcast %cst_15 : f32 to vector<256x32xf32>
    %21 = arith.cmpf ogt, %19, %20 : vector<256x32xf32>
    %cst_16 = arith.constant 2.000000e-01 : f32
    %22 = vector.broadcast %cst_16 : f32 to vector<256x32xf32>
    %23 = arith.mulf %22, %19 : vector<256x32xf32>
    %24 = arith.select %21, %19, %23 : vector<256x32xi1>, vector<256x32xf32>
    %c2 = arith.constant 2 : index
    %c0_17 = arith.constant 0 : index
    %c0_18 = arith.constant 0 : index
    %25 = vector.load %arg2[%c2, %c0_17, %c0_18] : memref<5x32x32xf32, #tpu.memory_space<vmem>>, vector<1x32x32xf32>
    %26 = vector.shape_cast %25 : vector<1x32x32xf32> to vector<32x32xf32>
    %cst_19 = arith.constant dense<0.000000e+00> : vector<256x32xf32>
    %27 = tpu.matmul %24, %26, %cst_19 {dimension_numbers = #tpu.dot_dimension_numbers<[1], [0], [0], [1], [0, 0, 1, 1], [], []>} : vector<256x32xf32>, vector<32x32xf32>, vector<256x32xf32> -> vector<256x32xf32>
    %c2_20 = arith.constant 2 : index
    %c0_21 = arith.constant 0 : index
    %c0_22 = arith.constant 0 : index
    %28 = vector.load %arg3[%c2_20, %c0_21, %c0_22] : memref<5x1x32xf32, #tpu.memory_space<vmem>>, vector<1x1x32xf32>
    %29 = vector.shape_cast %28 : vector<1x1x32xf32> to vector<1x32xf32>
    %30 = vector.broadcast %29 : vector<1x32xf32> to vector<256x32xf32>
    %31 = arith.addf %27, %30 : vector<256x32xf32>
    %cst_23 = arith.constant 0.000000e+00 : f32
    %32 = vector.broadcast %cst_23 : f32 to vector<256x32xf32>
    %33 = arith.cmpf ogt, %31, %32 : vector<256x32xf32>
    %cst_24 = arith.constant 2.000000e-01 : f32
    %34 = vector.broadcast %cst_24 : f32 to vector<256x32xf32>
    %35 = arith.mulf %34, %31 : vector<256x32xf32>
    %36 = arith.select %33, %31, %35 : vector<256x32xi1>, vector<256x32xf32>
    %c3 = arith.constant 3 : index
    %c0_25 = arith.constant 0 : index
    %c0_26 = arith.constant 0 : index
    %37 = vector.load %arg2[%c3, %c0_25, %c0_26] : memref<5x32x32xf32, #tpu.memory_space<vmem>>, vector<1x32x32xf32>
    %38 = vector.shape_cast %37 : vector<1x32x32xf32> to vector<32x32xf32>
    %cst_27 = arith.constant dense<0.000000e+00> : vector<256x32xf32>
    %39 = tpu.matmul %36, %38, %cst_27 {dimension_numbers = #tpu.dot_dimension_numbers<[1], [0], [0], [1], [0, 0, 1, 1], [], []>} : vector<256x32xf32>, vector<32x32xf32>, vector<256x32xf32> -> vector<256x32xf32>
    %c3_28 = arith.constant 3 : index
    %c0_29 = arith.constant 0 : index
    %c0_30 = arith.constant 0 : index
    %40 = vector.load %arg3[%c3_28, %c0_29, %c0_30] : memref<5x1x32xf32, #tpu.memory_space<vmem>>, vector<1x1x32xf32>
    %41 = vector.shape_cast %40 : vector<1x1x32xf32> to vector<1x32xf32>
    %42 = vector.broadcast %41 : vector<1x32xf32> to vector<256x32xf32>
    %43 = arith.addf %39, %42 : vector<256x32xf32>
    %cst_31 = arith.constant 0.000000e+00 : f32
    %44 = vector.broadcast %cst_31 : f32 to vector<256x32xf32>
    %45 = arith.cmpf ogt, %43, %44 : vector<256x32xf32>
    %cst_32 = arith.constant 2.000000e-01 : f32
    %46 = vector.broadcast %cst_32 : f32 to vector<256x32xf32>
    %47 = arith.mulf %46, %43 : vector<256x32xf32>
    %48 = arith.select %45, %43, %47 : vector<256x32xi1>, vector<256x32xf32>
    %c4 = arith.constant 4 : index
    %c0_33 = arith.constant 0 : index
    %c0_34 = arith.constant 0 : index
    %49 = vector.load %arg2[%c4, %c0_33, %c0_34] : memref<5x32x32xf32, #tpu.memory_space<vmem>>, vector<1x32x32xf32>
    %50 = vector.shape_cast %49 : vector<1x32x32xf32> to vector<32x32xf32>
    %cst_35 = arith.constant dense<0.000000e+00> : vector<256x32xf32>
    %51 = tpu.matmul %48, %50, %cst_35 {dimension_numbers = #tpu.dot_dimension_numbers<[1], [0], [0], [1], [0, 0, 1, 1], [], []>} : vector<256x32xf32>, vector<32x32xf32>, vector<256x32xf32> -> vector<256x32xf32>
    %c4_36 = arith.constant 4 : index
    %c0_37 = arith.constant 0 : index
    %c0_38 = arith.constant 0 : index
    %52 = vector.load %arg3[%c4_36, %c0_37, %c0_38] : memref<5x1x32xf32, #tpu.memory_space<vmem>>, vector<1x1x32xf32>
    %53 = vector.shape_cast %52 : vector<1x1x32xf32> to vector<1x32xf32>
    %54 = vector.broadcast %53 : vector<1x32xf32> to vector<256x32xf32>
    %55 = arith.addf %51, %54 : vector<256x32xf32>
    %56 = vector.extract_strided_slice %55 {offsets = [0, 0], sizes = [256, 2], strides = [1, 1]} : vector<256x32xf32> to vector<256x2xf32>
    %c0_39 = arith.constant 0 : index
    %c0_40 = arith.constant 0 : index
    %57 = vector.load %arg4[%c0_39, %c0_40] : memref<256x2xf32, #tpu.memory_space<vmem>>, vector<256x2xf32>
    tpu.vector_store %arg4[%c0_39, %c0_40], %56 {strides = array<i32>} : memref<256x2xf32, #tpu.memory_space<vmem>>, vector<256x2xf32>,
    return
  }
  func.func @transform_0(%arg0: i32) -> (i32, i32) {
    %c0_i32 = arith.constant 0 : i32
    %c0_i32_0 = arith.constant 0 : i32
    return %arg0, %c0_i32 : i32, i32
  }
  func.func @transform_1(%arg0: i32) -> (i32, i32, i32) {
    %c0_i32 = arith.constant 0 : i32
    %c0_i32_0 = arith.constant 0 : i32
    %c0_i32_1 = arith.constant 0 : i32
    %c0_i32_2 = arith.constant 0 : i32
    return %c0_i32, %c0_i32_0, %c0_i32_1 : i32, i32, i32
  }
  func.func @transform_2(%arg0: i32) -> (i32, i32, i32) {
    %c0_i32 = arith.constant 0 : i32
    %c0_i32_0 = arith.constant 0 : i32
    %c0_i32_1 = arith.constant 0 : i32
    %c0_i32_2 = arith.constant 0 : i32
    return %c0_i32, %c0_i32_0, %c0_i32_1 : i32, i32, i32
  }
  func.func @transform_3(%arg0: i32) -> (i32, i32) {
    %c0_i32 = arith.constant 0 : i32
    %c0_i32_0 = arith.constant 0 : i32
    return %arg0, %c0_i32 : i32, i32
  }
}

</mosaic_0001>

<llo_original>
// kernel: tpu_custom_call.1
$region0: #{tpu_custom_call.1}
  #allocation0 [shape = 'u32[]', space=smem, size = 0x4, offset = 0x4, fixed_abs, tag = 'smem constant byte address 0x4 - core index']
  #allocation1 [shape = 'u32[144,128]{1,0:T(1,128)}', space=vmem, size = 0x12000, scoped, tag = 'internal scratch']
  %s0 = inlined_call_operand.vmem [shape: f32[256,32], index: 0, kind: input, shape index: {}]
  %s1 = inlined_call_operand.vmem [shape: f32[5,32,32], index: 1, kind: input, shape index: {}]
  %s2 = inlined_call_operand.vmem [shape: f32[5,1,32], index: 2, kind: input, shape index: {}]
  %s3 = inlined_call_operand.vmem [shape: f32[256,2], index: 3, kind: output, shape index: {}]
  %s4 = sld [smem:[#allocation0]]
  $region22: #{tpu_custom_call.1} parent=0
    _
  %s6 = ssub.s32 1, %s4
  %s7 = scalar_select 0, %s6, %s4
  // Predicated region
  $region2: #{tpu_custom_call.1} parent=0 // pred_check
    _
  $region3: #{tpu_custom_call.1} parent=0 // pred_check_branch
    %9 = sbr.rel (0) target = $region5
  $region4: #{tpu_custom_call.1} parent=0 // pred_region
    _
  $region5: #{tpu_custom_call.1} parent=0 // pred_fallthru
    _
  // Predicated region
  $region6: #{tpu_custom_call.1} parent=0 // pred_check
    _
  $region7: #{tpu_custom_call.1} parent=0 // pred_check_branch
    %11 = sbr.rel (0) target = $region9
  $region8: #{tpu_custom_call.1} parent=0 // pred_region
    _
  $region9: #{tpu_custom_call.1} parent=0 // pred_fallthru
    _
  // Predicated region
  $region10: #{tpu_custom_call.1} parent=0 // pred_check
    _
  $region11: #{tpu_custom_call.1} parent=0 // pred_check_branch
    %13 = sbr.rel (0) target = $region13
  $region12: #{tpu_custom_call.1} parent=0 // pred_region
    _
  $region13: #{tpu_custom_call.1} parent=0 // pred_fallthru
    _
  %v14 = vld [vmem:[%s0] sm:$0xff]
  %v15 = vld [vmem:[%s0 + $0x8] sm:$0xff]
  %v16 = vld [vmem:[%s0 + $0x10] sm:$0xff]
  %v17 = vld [vmem:[%s0 + $0x18] sm:$0xff]
  %v18 = vld [vmem:[%s0 + $0x20] sm:$0xff]
  %v19 = vld [vmem:[%s0 + $0x28] sm:$0xff]
  %v20 = vld [vmem:[%s0 + $0x30] sm:$0xff]
  %v21 = vld [vmem:[%s0 + $0x38] sm:$0xff]
  %v22 = vld [vmem:[%s0 + $0x40] sm:$0xff]
  %v23 = vld [vmem:[%s0 + $0x48] sm:$0xff]
  %v24 = vld [vmem:[%s0 + $0x50] sm:$0xff]
  %v25 = vld [vmem:[%s0 + $0x58] sm:$0xff]
  %v26 = vld [vmem:[%s0 + $0x60] sm:$0xff]
  %v27 = vld [vmem:[%s0 + $0x68] sm:$0xff]
  %v28 = vld [vmem:[%s0 + $0x70] sm:$0xff]
  %v29 = vld [vmem:[%s0 + $0x78] sm:$0xff]
  %v30 = vld [vmem:[%s0 + $0x80] sm:$0xff]
  %v31 = vld [vmem:[%s0 + $0x88] sm:$0xff]
  %v32 = vld [vmem:[%s0 + $0x90] sm:$0xff]
  %v33 = vld [vmem:[%s0 + $0x98] sm:$0xff]
  %v34 = vld [vmem:[%s0 + $0xa0] sm:$0xff]
  %v35 = vld [vmem:[%s0 + $0xa8] sm:$0xff]
  %v36 = vld [vmem:[%s0 + $0xb0] sm:$0xff]
  %v37 = vld [vmem:[%s0 + $0xb8] sm:$0xff]
  %v38 = vld [vmem:[%s0 + $0xc0] sm:$0xff]
  %v39 = vld [vmem:[%s0 + $0xc8] sm:$0xff]
  %v40 = vld [vmem:[%s0 + $0xd0] sm:$0xff]
  %v41 = vld [vmem:[%s0 + $0xd8] sm:$0xff]
  %v42 = vld [vmem:[%s0 + $0xe0] sm:$0xff]
  %v43 = vld [vmem:[%s0 + $0xe8] sm:$0xff]
  %v44 = vld [vmem:[%s0 + $0xf0] sm:$0xff]
  %v45 = vld [vmem:[%s0 + $0xf8] sm:$0xff]
  %v46 = vld [vmem:[%s1] sm:$0xff]
  %v47 = vld [vmem:[%s1 + $0x8] sm:$0xff]
  %v48 = vld [vmem:[%s1 + $0x10] sm:$0xff]
  %v49 = vld [vmem:[%s1 + $0x18] sm:$0xff]
  %v50 = vld [vmem:[%s2] sm:$0x1]
  %v52 = vlaneseq
  %v53 = vshrl.u32 %v52, 7
  %v54 = vsub.s32 0, %v53
  %v55 = vrot.slane %v50, %v54
  %vm57 = vcmask 261120
  %v59 = vsel %vm57, %v14, 0
  %v62 = vsel %vm57, %v15, 0
  %v65 = vsel %vm57, %v16, 0
  %v68 = vsel %vm57, %v17, 0
  %v71 = vsel %vm57, %v18, 0
  %v74 = vsel %vm57, %v19, 0
  %v77 = vsel %vm57, %v20, 0
  %v80 = vsel %vm57, %v21, 0
  %v83 = vsel %vm57, %v22, 0
  %v86 = vsel %vm57, %v23, 0
  %v89 = vsel %vm57, %v24, 0
  %v92 = vsel %vm57, %v25, 0
  %v95 = vsel %vm57, %v26, 0
  %v98 = vsel %vm57, %v27, 0
  %v101 = vsel %vm57, %v28, 0
  %v104 = vsel %vm57, %v29, 0
  %v107 = vsel %vm57, %v30, 0
  %v110 = vsel %vm57, %v31, 0
  %v113 = vsel %vm57, %v32, 0
  %v116 = vsel %vm57, %v33, 0
  %v119 = vsel %vm57, %v34, 0
  %v122 = vsel %vm57, %v35, 0
  %v125 = vsel %vm57, %v36, 0
  %v128 = vsel %vm57, %v37, 0
  %v131 = vsel %vm57, %v38, 0
  %v134 = vsel %vm57, %v39, 0
  %v137 = vsel %vm57, %v40, 0
  %v140 = vsel %vm57, %v41, 0
  %v143 = vsel %vm57, %v42, 0
  %v146 = vsel %vm57, %v43, 0
  %v149 = vsel %vm57, %v44, 0
  %v152 = vsel %vm57, %v45, 0
  %154 = vmatprep.subr.mxu0 0.0
  %155 = vmatpush1.msra.mxu0 0.0
  %156 = vmatprep.subr.mxu0 0.0
  %157 = vmatpush1.msra.mxu0 0.0
  %158 = vmatprep.subr.mxu0 0.0
  %159 = vmatpush1.msra.mxu0 0.0
  %160 = vmatprep.subr.mxu0 0.0
  %161 = vmatpush1.msra.mxu0 0.0
  %162 = vmatprep.subr.mxu0 0.0
  %163 = vmatpush1.msra.mxu0 0.0
  %164 = vmatprep.subr.mxu0 0.0
  %165 = vmatpush1.msra.mxu0 0.0
  %166 = vmatprep.subr.mxu0 0.0
  %167 = vmatpush1.msra.mxu0 0.0
  %168 = vmatprep.subr.mxu0 0.0
  %169 = vmatpush1.msra.mxu0 0.0
  %170 = vmatprep.subr.mxu0 0.0
  %171 = vmatpush1.msra.mxu0 0.0
  %172 = vmatprep.subr.mxu0 0.0
  %173 = vmatpush1.msra.mxu0 0.0
  %174 = vmatprep.subr.mxu0 0.0
  %175 = vmatpush1.msra.mxu0 0.0
  %176 = vmatprep.subr.mxu0 0.0
  %177 = vmatpush1.msra.mxu0 0.0
  %178 = vmatprep.subr.mxu0 0.0
  %179 = vmatpush1.msra.mxu0 %v49
  %180 = vmatprep.subr.mxu0 0.0
  %181 = vmatpush1.msra.mxu0 %v48
  %182 = vmatprep.subr.mxu0 0.0
  %183 = vmatpush1.msra.mxu0 %v47
  %184 = vmatprep.subr.mxu0 0.0
  %185 = vmatpush1.msra.mxu0 %v46
  %186 = vmatprep.subr.mxu0 0.0
  %187 = vmatpush2.msra.mxu0 0.0
  %188 = vmatprep.subr.mxu0 0.0
  %189 = vmatpush2.msra.mxu0 0.0
  %190 = vmatprep.subr.mxu0 0.0
  %191 = vmatpush2.msra.mxu0 0.0
  %192 = vmatprep.subr.mxu0 0.0
  %193 = vmatpush2.msra.mxu0 0.0
  %194 = vmatprep.subr.mxu0 0.0
  %195 = vmatpush2.msra.mxu0 0.0
  %196 = vmatprep.subr.mxu0 0.0
  %197 = vmatpush2.msra.mxu0 0.0
  %198 = vmatprep.subr.mxu0 0.0
  %199 = vmatpush2.msra.mxu0 0.0
  %200 = vmatprep.subr.mxu0 0.0
  %201 = vmatpush2.msra.mxu0 0.0
  %202 = vmatprep.subr.mxu0 0.0
  %203 = vmatpush2.msra.mxu0 0.0
  %204 = vmatprep.subr.mxu0 0.0
  %205 = vmatpush2.msra.mxu0 0.0
  %206 = vmatprep.subr.mxu0 0.0
  %207 = vmatpush2.msra.mxu0 0.0
  %208 = vmatprep.subr.mxu0 0.0
  %209 = vmatpush2.msra.mxu0 0.0
  %210 = vmatprep.subr.mxu0 0.0
  %211 = vmatpush2.msra.mxu0 0.0
  %212 = vmatprep.subr.mxu0 0.0
  %213 = vmatpush2.msra.mxu0 0.0
  %214 = vmatprep.subr.mxu0 0.0
  %215 = vmatpush2.msra.mxu0 0.0
  %216 = vmatprep.subr.mxu0 0.0
  %217 = vmatpush2.msra.mxu0 0.0
  %218 = vmatprep.mubr.f32.mxu0 0.0
  %219 = vmatmul.mubr.f32.gmra.mxu0 %v59
  %v220 = vpop.f32.mrf.mxu0
  %v221 = vadd.f32 %v55, %v220
  %v222 = vpop.f32.mrf.mxu0
  %223 = vmatprep.mubr.f32.mxu0 0.0
  %224 = vmatmul.mubr.f32.gmra.mxu0 %v62
  %v225 = vpop.f32.mrf.mxu0
  %v226 = vadd.f32 %v55, %v225
  %v227 = vpop.f32.mrf.mxu0
  %228 = vmatprep.mubr.f32.mxu0 0.0
  %229 = vmatmul.mubr.f32.gmra.mxu0 %v65
  %v230 = vpop.f32.mrf.mxu0
  %v231 = vadd.f32 %v55, %v230
  %v232 = vpop.f32.mrf.mxu0
  %233 = vmatprep.mubr.f32.mxu0 0.0
  %234 = vmatmul.mubr.f32.gmra.mxu0 %v68
  %v235 = vpop.f32.mrf.mxu0
  %v236 = vadd.f32 %v55, %v235
  %v237 = vpop.f32.mrf.mxu0
  %238 = vmatprep.mubr.f32.mxu0 0.0
  %239 = vmatmul.mubr.f32.gmra.mxu0 %v71
  %v240 = vpop.f32.mrf.mxu0
  %v241 = vadd.f32 %v55, %v240
  %v242 = vpop.f32.mrf.mxu0
  %243 = vmatprep.mubr.f32.mxu0 0.0
  %244 = vmatmul.mubr.f32.gmra.mxu0 %v74
  %v245 = vpop.f32.mrf.mxu0
  %v246 = vadd.f32 %v55, %v245
  %v247 = vpop.f32.mrf.mxu0
  %248 = vmatprep.mubr.f32.mxu0 0.0
  %249 = vmatmul.mubr.f32.gmra.mxu0 %v77
  %v250 = vpop.f32.mrf.mxu0
  %v251 = vadd.f32 %v55, %v250
  %v252 = vpop.f32.mrf.mxu0
  %253 = vmatprep.mubr.f32.mxu0 0.0
  %254 = vmatmul.mubr.f32.gmra.mxu0 %v80
  %v255 = vpop.f32.mrf.mxu0
  %v256 = vadd.f32 %v55, %v255
  %v257 = vpop.f32.mrf.mxu0
  %258 = vmatprep.mubr.f32.mxu0 0.0
  %259 = vmatmul.mubr.f32.gmra.mxu0 %v83
  %v260 = vpop.f32.mrf.mxu0
  %v261 = vadd.f32 %v55, %v260
  %v262 = vpop.f32.mrf.mxu0
  %263 = vmatprep.mubr.f32.mxu0 0.0
  %264 = vmatmul.mubr.f32.gmra.mxu0 %v86
  %v265 = vpop.f32.mrf.mxu0
  %v266 = vadd.f32 %v55, %v265
  %v267 = vpop.f32.mrf.mxu0
  %268 = vmatprep.mubr.f32.mxu0 0.0
  %269 = vmatmul.mubr.f32.gmra.mxu0 %v89
  %v270 = vpop.f32.mrf.mxu0
  %v271 = vadd.f32 %v55, %v270
  %v272 = vpop.f32.mrf.mxu0
  %273 = vmatprep.mubr.f32.mxu0 0.0
  %274 = vmatmul.mubr.f32.gmra.mxu0 %v92
  %v275 = vpop.f32.mrf.mxu0
  %v276 = vadd.f32 %v55, %v275
  %v277 = vpop.f32.mrf.mxu0
  %278 = vmatprep.mubr.f32.mxu0 0.0
  %279 = vmatmul.mubr.f32.gmra.mxu0 %v95
  %v280 = vpop.f32.mrf.mxu0
  %v281 = vadd.f32 %v55, %v280
  %v282 = vpop.f32.mrf.mxu0
  %283 = vmatprep.mubr.f32.mxu0 0.0
  %284 = vmatmul.mubr.f32.gmra.mxu0 %v98
  %v285 = vpop.f32.mrf.mxu0
  %v286 = vadd.f32 %v55, %v285
  %v287 = vpop.f32.mrf.mxu0
  %288 = vmatprep.mubr.f32.mxu0 0.0
  %289 = vmatmul.mubr.f32.gmra.mxu0 %v101
  %v290 = vpop.f32.mrf.mxu0
  %v291 = vadd.f32 %v55, %v290
  %v292 = vpop.f32.mrf.mxu0
  %293 = vmatprep.mubr.f32.mxu0 0.0
  %294 = vmatmul.mubr.f32.gmra.mxu0 %v104
  %v295 = vpop.f32.mrf.mxu0
  %v296 = vadd.f32 %v55, %v295
  %v297 = vpop.f32.mrf.mxu0
  %298 = vmatprep.mubr.f32.mxu0 0.0
  %299 = vmatmul.mubr.f32.gmra.mxu0 %v107
  %v300 = vpop.f32.mrf.mxu0
  %v301 = vadd.f32 %v55, %v300
  %v302 = vpop.f32.mrf.mxu0
  %303 = vmatprep.mubr.f32.mxu0 0.0
  %304 = vmatmul.mubr.f32.gmra.mxu0 %v110
  %v305 = vpop.f32.mrf.mxu0
  %v306 = vadd.f32 %v55, %v305
  %v307 = vpop.f32.mrf.mxu0
  %308 = vmatprep.mubr.f32.mxu0 0.0
  %309 = vmatmul.mubr.f32.gmra.mxu0 %v113
  %v310 = vpop.f32.mrf.mxu0
  %v311 = vadd.f32 %v55, %v310
  %v312 = vpop.f32.mrf.mxu0
  %313 = vmatprep.mubr.f32.mxu0 0.0
  %314 = vmatmul.mubr.f32.gmra.mxu0 %v116
  %v315 = vpop.f32.mrf.mxu0
  %v316 = vadd.f32 %v55, %v315
  %v317 = vpop.f32.mrf.mxu0
  %318 = vmatprep.mubr.f32.mxu0 0.0
  %319 = vmatmul.mubr.f32.gmra.mxu0 %v119
  %v320 = vpop.f32.mrf.mxu0
  %v321 = vadd.f32 %v55, %v320
  %v322 = vpop.f32.mrf.mxu0
  %323 = vmatprep.mubr.f32.mxu0 0.0
  %324 = vmatmul.mubr.f32.gmra.mxu0 %v122
  %v325 = vpop.f32.mrf.mxu0
  %v326 = vadd.f32 %v55, %v325
  %v327 = vpop.f32.mrf.mxu0
  %328 = vmatprep.mubr.f32.mxu0 0.0
  %329 = vmatmul.mubr.f32.gmra.mxu0 %v125
  %v330 = vpop.f32.mrf.mxu0
  %v331 = vadd.f32 %v55, %v330
  %v332 = vpop.f32.mrf.mxu0
  %333 = vmatprep.mubr.f32.mxu0 0.0
  %334 = vmatmul.mubr.f32.gmra.mxu0 %v128
  %v335 = vpop.f32.mrf.mxu0
  %v336 = vadd.f32 %v55, %v335
  %v337 = vpop.f32.mrf.mxu0
  %338 = vmatprep.mubr.f32.mxu0 0.0
  %339 = vmatmul.mubr.f32.gmra.mxu0 %v131
  %v340 = vpop.f32.mrf.mxu0
  %v341 = vadd.f32 %v55, %v340
  %v342 = vpop.f32.mrf.mxu0
  %343 = vmatprep.mubr.f32.mxu0 0.0
  %344 = vmatmul.mubr.f32.gmra.mxu0 %v134
  %v345 = vpop.f32.mrf.mxu0
  %v346 = vadd.f32 %v55, %v345
  %v347 = vpop.f32.mrf.mxu0
  %348 = vmatprep.mubr.f32.mxu0 0.0
  %349 = vmatmul.mubr.f32.gmra.mxu0 %v137
  %v350 = vpop.f32.mrf.mxu0
  %v351 = vadd.f32 %v55, %v350
  %v352 = vpop.f32.mrf.mxu0
  %353 = vmatprep.mubr.f32.mxu0 0.0
  %354 = vmatmul.mubr.f32.gmra.mxu0 %v140
  %v355 = vpop.f32.mrf.mxu0
  %v356 = vadd.f32 %v55, %v355
  %v357 = vpop.f32.mrf.mxu0
  %358 = vmatprep.mubr.f32.mxu0 0.0
  %359 = vmatmul.mubr.f32.gmra.mxu0 %v143
  %v360 = vpop.f32.mrf.mxu0
  %v361 = vadd.f32 %v55, %v360
  %v362 = vpop.f32.mrf.mxu0
  %363 = vmatprep.mubr.f32.mxu0 0.0
  %364 = vmatmul.mubr.f32.gmra.mxu0 %v146
  %v365 = vpop.f32.mrf.mxu0
  %v366 = vadd.f32 %v55, %v365
  %v367 = vpop.f32.mrf.mxu0
  %368 = vmatprep.mubr.f32.mxu0 0.0
  %369 = vmatmul.mubr.f32.gmra.mxu0 %v149
  %v370 = vpop.f32.mrf.mxu0
  %v371 = vadd.f32 %v55, %v370
  %v372 = vpop.f32.mrf.mxu0
  %373 = vmatprep.mubr.f32.mxu0 0.0
  %374 = vmatmul.mubr.f32.gmra.mxu0 %v152
  %v375 = vpop.f32.mrf.mxu0
  %v376 = vadd.f32 %v55, %v375
  %v377 = vpop.f32.mrf.mxu0
  %378 = vdwg.mxu0
  %vm379 = vcmp.gt.f32.partialorder %v221, 0.0
  %vm380 = vcmp.gt.f32.partialorder %v226, 0.0
  %vm381 = vcmp.gt.f32.partialorder %v231, 0.0
  %vm382 = vcmp.gt.f32.partialorder %v236, 0.0
  %vm383 = vcmp.gt.f32.partialorder %v241, 0.0
  %vm384 = vcmp.gt.f32.partialorder %v246, 0.0
  %vm385 = vcmp.gt.f32.partialorder %v251, 0.0
  %vm386 = vcmp.gt.f32.partialorder %v256, 0.0
  %vm387 = vcmp.gt.f32.partialorder %v261, 0.0
  %vm388 = vcmp.gt.f32.partialorder %v266, 0.0
  %vm389 = vcmp.gt.f32.partialorder %v271, 0.0
  %vm390 = vcmp.gt.f32.partialorder %v276, 0.0
  %vm391 = vcmp.gt.f32.partialorder %v281, 0.0
  %vm392 = vcmp.gt.f32.partialorder %v286, 0.0
  %vm393 = vcmp.gt.f32.partialorder %v291, 0.0
  %vm394 = vcmp.gt.f32.partialorder %v296, 0.0
  %vm395 = vcmp.gt.f32.partialorder %v301, 0.0
  %vm396 = vcmp.gt.f32.partialorder %v306, 0.0
  %vm397 = vcmp.gt.f32.partialorder %v311, 0.0
  %vm398 = vcmp.gt.f32.partialorder %v316, 0.0
  %vm399 = vcmp.gt.f32.partialorder %v321, 0.0
  %vm400 = vcmp.gt.f32.partialorder %v326, 0.0
  %vm401 = vcmp.gt.f32.partialorder %v331, 0.0
  %vm402 = vcmp.gt.f32.partialorder %v336, 0.0
  %vm403 = vcmp.gt.f32.partialorder %v341, 0.0
  %vm404 = vcmp.gt.f32.partialorder %v346, 0.0
  %vm405 = vcmp.gt.f32.partialorder %v351, 0.0
  %vm406 = vcmp.gt.f32.partialorder %v356, 0.0
  %vm407 = vcmp.gt.f32.partialorder %v361, 0.0
  %vm408 = vcmp.gt.f32.partialorder %v366, 0.0
  %vm409 = vcmp.gt.f32.partialorder %v371, 0.0
  %vm410 = vcmp.gt.f32.partialorder %v376, 0.0
  %v411 = vmul.f32 %v221, 0.2
  %v412 = vmul.f32 %v226, 0.2
  %v413 = vmul.f32 %v231, 0.2
  %v414 = vmul.f32 %v236, 0.2
  %v415 = vmul.f32 %v241, 0.2
  %v416 = vmul.f32 %v246, 0.2
  %v417 = vmul.f32 %v251, 0.2
  %v418 = vmul.f32 %v256, 0.2
  %v419 = vmul.f32 %v261, 0.2
  %v420 = vmul.f32 %v266, 0.2
  %v421 = vmul.f32 %v271, 0.2
  %v422 = vmul.f32 %v276, 0.2
  %v423 = vmul.f32 %v281, 0.2
  %v424 = vmul.f32 %v286, 0.2
  %v425 = vmul.f32 %v291, 0.2
  %v426 = vmul.f32 %v296, 0.2
  %v427 = vmul.f32 %v301, 0.2
  %v428 = vmul.f32 %v306, 0.2
  %v429 = vmul.f32 %v311, 0.2
  %v430 = vmul.f32 %v316, 0.2
  %v431 = vmul.f32 %v321, 0.2
  %v432 = vmul.f32 %v326, 0.2
  %v433 = vmul.f32 %v331, 0.2
  %v434 = vmul.f32 %v336, 0.2
  %v435 = vmul.f32 %v341, 0.2
  %v436 = vmul.f32 %v346, 0.2
  %v437 = vmul.f32 %v351, 0.2
  %v438 = vmul.f32 %v356, 0.2
  %v439 = vmul.f32 %v361, 0.2
  %v440 = vmul.f32 %v366, 0.2
  %v441 = vmul.f32 %v371, 0.2
  %v442 = vmul.f32 %v376, 0.2
  %v443 = vsel %vm379, %v221, %v411
  %v444 = vsel %vm380, %v226, %v412
  %v445 = vsel %vm381, %v231, %v413
  %v446 = vsel %vm382, %v236, %v414
  %v447 = vsel %vm383, %v241, %v415
  %v448 = vsel %vm384, %v246, %v416
  %v449 = vsel %vm385, %v251, %v417
  %v450 = vsel %vm386, %v256, %v418
  %v451 = vsel %vm387, %v261, %v419
  %v452 = vsel %vm388, %v266, %v420
  %v453 = vsel %vm389, %v271, %v421
  %v454 = vsel %vm390, %v276, %v422
  %v455 = vsel %vm391, %v281, %v423
  %v456 = vsel %vm392, %v286, %v424
  %v457 = vsel %vm393, %v291, %v425
  %v458 = vsel %vm394, %v296, %v426
  %v459 = vsel %vm395, %v301, %v427
  %v460 = vsel %vm396, %v306, %v428
  %v461 = vsel %vm397, %v311, %v429
  %v462 = vsel %vm398, %v316, %v430
  %v463 = vsel %vm399, %v321, %v431
  %v464 = vsel %vm400, %v326, %v432
  %v465 = vsel %vm401, %v331, %v433
  %v466 = vsel %vm402, %v336, %v434
  %v467 = vsel %vm403, %v341, %v435
  %v468 = vsel %vm404, %v346, %v436
  %v469 = vsel %vm405, %v351, %v437
  %v470 = vsel %vm406, %v356, %v438
  %v471 = vsel %vm407, %v361, %v439
  %v472 = vsel %vm408, %v366, %v440
  %v473 = vsel %vm409, %v371, %v441
  %v474 = vsel %vm410, %v376, %v442
  %s475 = scalar_lea.vmem %s1, 32
  %v476 = vld [vmem:[%s475] sm:$0xff]
  %v477 = vld [vmem:[%s475 + $0x8] sm:$0xff]
  %v478 = vld [vmem:[%s475 + $0x10] sm:$0xff]
  %v479 = vld [vmem:[%s475 + $0x18] sm:$0xff]
  %s480 = scalar_lea.vmem %s2, 1
  %v481 = vld [vmem:[%s480] sm:$0x1]
  %v483 = vlaneseq
  %v484 = vshrl.u32 %v483, 7
  %v485 = vsub.s32 0, %v484
  %v486 = vrot.slane %v481, %v485
  %v489 = vsel %vm57, %v443, 0
  %v492 = vsel %vm57, %v444, 0
  %v495 = vsel %vm57, %v445, 0
  %v498 = vsel %vm57, %v446, 0
  %v501 = vsel %vm57, %v447, 0
  %v504 = vsel %vm57, %v448, 0
  %v507 = vsel %vm57, %v449, 0
  %v510 = vsel %vm57, %v450, 0
  %v513 = vsel %vm57, %v451, 0
  %v516 = vsel %vm57, %v452, 0
  %v519 = vsel %vm57, %v453, 0
  %v522 = vsel %vm57, %v454, 0
  %v525 = vsel %vm57, %v455, 0
  %v528 = vsel %vm57, %v456, 0
  %v531 = vsel %vm57, %v457, 0
  %v534 = vsel %vm57, %v458, 0
  %v537 = vsel %vm57, %v459, 0
  %v540 = vsel %vm57, %v460, 0
  %v543 = vsel %vm57, %v461, 0
  %v546 = vsel %vm57, %v462, 0
  %v549 = vsel %vm57, %v463, 0
  %v552 = vsel %vm57, %v464, 0
  %v555 = vsel %vm57, %v465, 0
  %v558 = vsel %vm57, %v466, 0
  %v561 = vsel %vm57, %v467, 0
  %v564 = vsel %vm57, %v468, 0
  %v567 = vsel %vm57, %v469, 0
  %v570 = vsel %vm57, %v470, 0
  %v573 = vsel %vm57, %v471, 0
  %v576 = vsel %vm57, %v472, 0
  %v579 = vsel %vm57, %v473, 0
  %v582 = vsel %vm57, %v474, 0
  %584 = vmatprep.subr.mxu0 0.0
  %585 = vmatpush1.msra.mxu0 0.0
  %586 = vmatprep.subr.mxu0 0.0
  %587 = vmatpush1.msra.mxu0 0.0
  %588 = vmatprep.subr.mxu0 0.0
  %589 = vmatpush1.msra.mxu0 0.0
  %590 = vmatprep.subr.mxu0 0.0
  %591 = vmatpush1.msra.mxu0 0.0
  %592 = vmatprep.subr.mxu0 0.0
  %593 = vmatpush1.msra.mxu0 0.0
  %594 = vmatprep.subr.mxu0 0.0
  %595 = vmatpush1.msra.mxu0 0.0
  %596 = vmatprep.subr.mxu0 0.0
  %597 = vmatpush1.msra.mxu0 0.0
  %598 = vmatprep.subr.mxu0 0.0
  %599 = vmatpush1.msra.mxu0 0.0
  %600 = vmatprep.subr.mxu0 0.0
  %601 = vmatpush1.msra.mxu0 0.0
  %602 = vmatprep.subr.mxu0 0.0
  %603 = vmatpush1.msra.mxu0 0.0
  %604 = vmatprep.subr.mxu0 0.0
  %605 = vmatpush1.msra.mxu0 0.0
  %606 = vmatprep.subr.mxu0 0.0
  %607 = vmatpush1.msra.mxu0 0.0
  %608 = vmatprep.subr.mxu0 0.0
  %609 = vmatpush1.msra.mxu0 %v479
  %610 = vmatprep.subr.mxu0 0.0
  %611 = vmatpush1.msra.mxu0 %v478
  %612 = vmatprep.subr.mxu0 0.0
  %613 = vmatpush1.msra.mxu0 %v477
  %614 = vmatprep.subr.mxu0 0.0
  %615 = vmatpush1.msra.mxu0 %v476
  %616 = vmatprep.subr.mxu0 0.0
  %617 = vmatpush2.msra.mxu0 0.0
  %618 = vmatprep.subr.mxu0 0.0
  %619 = vmatpush2.msra.mxu0 0.0
  %620 = vmatprep.subr.mxu0 0.0
  %621 = vmatpush2.msra.mxu0 0.0
  %622 = vmatprep.subr.mxu0 0.0
  %623 = vmatpush2.msra.mxu0 0.0
  %624 = vmatprep.subr.mxu0 0.0
  %625 = vmatpush2.msra.mxu0 0.0
  %626 = vmatprep.subr.mxu0 0.0
  %627 = vmatpush2.msra.mxu0 0.0
  %628 = vmatprep.subr.mxu0 0.0
  %629 = vmatpush2.msra.mxu0 0.0
  %630 = vmatprep.subr.mxu0 0.0
  %631 = vmatpush2.msra.mxu0 0.0
  %632 = vmatprep.subr.mxu0 0.0
  %633 = vmatpush2.msra.mxu0 0.0
  %634 = vmatprep.subr.mxu0 0.0
  %635 = vmatpush2.msra.mxu0 0.0
  %636 = vmatprep.subr.mxu0 0.0
  %637 = vmatpush2.msra.mxu0 0.0
  %638 = vmatprep.subr.mxu0 0.0
  %639 = vmatpush2.msra.mxu0 0.0
  %640 = vmatprep.subr.mxu0 0.0
  %641 = vmatpush2.msra.mxu0 0.0
  %642 = vmatprep.subr.mxu0 0.0
  %643 = vmatpush2.msra.mxu0 0.0
  %644 = vmatprep.subr.mxu0 0.0
  %645 = vmatpush2.msra.mxu0 0.0
  %646 = vmatprep.subr.mxu0 0.0
  %647 = vmatpush2.msra.mxu0 0.0
  %648 = vmatprep.mubr.f32.mxu0 0.0
  %649 = vmatmul.mubr.f32.gmra.mxu0 %v489
  %v650 = vpop.f32.mrf.mxu0
  %v651 = vadd.f32 %v486, %v650
  %v652 = vpop.f32.mrf.mxu0
  %653 = vmatprep.mubr.f32.mxu0 0.0
  %654 = vmatmul.mubr.f32.gmra.mxu0 %v492
  %v655 = vpop.f32.mrf.mxu0
  %v656 = vadd.f32 %v486, %v655
  %v657 = vpop.f32.mrf.mxu0
  %658 = vmatprep.mubr.f32.mxu0 0.0
  %659 = vmatmul.mubr.f32.gmra.mxu0 %v495
  %v660 = vpop.f32.mrf.mxu0
  %v661 = vadd.f32 %v486, %v660
  %v662 = vpop.f32.mrf.mxu0
  %663 = vmatprep.mubr.f32.mxu0 0.0
  %664 = vmatmul.mubr.f32.gmra.mxu0 %v498
  %v665 = vpop.f32.mrf.mxu0
  %v666 = vadd.f32 %v486, %v665
  %v667 = vpop.f32.mrf.mxu0
  %668 = vmatprep.mubr.f32.mxu0 0.0
  %669 = vmatmul.mubr.f32.gmra.mxu0 %v501
  %v670 = vpop.f32.mrf.mxu0
  %v671 = vadd.f32 %v486, %v670
  %v672 = vpop.f32.mrf.mxu0
  %673 = vmatprep.mubr.f32.mxu0 0.0
  %674 = vmatmul.mubr.f32.gmra.mxu0 %v504
  %v675 = vpop.f32.mrf.mxu0
  %v676 = vadd.f32 %v486, %v675
  %v677 = vpop.f32.mrf.mxu0
  %678 = vmatprep.mubr.f32.mxu0 0.0
  %679 = vmatmul.mubr.f32.gmra.mxu0 %v507
  %v680 = vpop.f32.mrf.mxu0
  %v681 = vadd.f32 %v486, %v680
  %v682 = vpop.f32.mrf.mxu0
  %683 = vmatprep.mubr.f32.mxu0 0.0
  %684 = vmatmul.mubr.f32.gmra.mxu0 %v510
  %v685 = vpop.f32.mrf.mxu0
  %v686 = vadd.f32 %v486, %v685
  %v687 = vpop.f32.mrf.mxu0
  %688 = vmatprep.mubr.f32.mxu0 0.0
  %689 = vmatmul.mubr.f32.gmra.mxu0 %v513
  %v690 = vpop.f32.mrf.mxu0
  %v691 = vadd.f32 %v486, %v690
  %v692 = vpop.f32.mrf.mxu0
  %693 = vmatprep.mubr.f32.mxu0 0.0
  %694 = vmatmul.mubr.f32.gmra.mxu0 %v516
  %v695 = vpop.f32.mrf.mxu0
  %v696 = vadd.f32 %v486, %v695
  %v697 = vpop.f32.mrf.mxu0
  %698 = vmatprep.mubr.f32.mxu0 0.0
  %699 = vmatmul.mubr.f32.gmra.mxu0 %v519
  %v700 = vpop.f32.mrf.mxu0
  %v701 = vadd.f32 %v486, %v700
  %v702 = vpop.f32.mrf.mxu0
  %703 = vmatprep.mubr.f32.mxu0 0.0
  %704 = vmatmul.mubr.f32.gmra.mxu0 %v522
  %v705 = vpop.f32.mrf.mxu0
  %v706 = vadd.f32 %v486, %v705
  %v707 = vpop.f32.mrf.mxu0
  %708 = vmatprep.mubr.f32.mxu0 0.0
  %709 = vmatmul.mubr.f32.gmra.mxu0 %v525
  %v710 = vpop.f32.mrf.mxu0
  %v711 = vadd.f32 %v486, %v710
  %v712 = vpop.f32.mrf.mxu0
  %713 = vmatprep.mubr.f32.mxu0 0.0
  %714 = vmatmul.mubr.f32.gmra.mxu0 %v528
  %v715 = vpop.f32.mrf.mxu0
  %v716 = vadd.f32 %v486, %v715
  %v717 = vpop.f32.mrf.mxu0
  %718 = vmatprep.mubr.f32.mxu0 0.0
  %719 = vmatmul.mubr.f32.gmra.mxu0 %v531
  %v720 = vpop.f32.mrf.mxu0
  %v721 = vadd.f32 %v486, %v720
  %v722 = vpop.f32.mrf.mxu0
  %723 = vmatprep.mubr.f32.mxu0 0.0
  %724 = vmatmul.mubr.f32.gmra.mxu0 %v534
  %v725 = vpop.f32.mrf.mxu0
  %v726 = vadd.f32 %v486, %v725
  %v727 = vpop.f32.mrf.mxu0
  %728 = vmatprep.mubr.f32.mxu0 0.0
  %729 = vmatmul.mubr.f32.gmra.mxu0 %v537
  %v730 = vpop.f32.mrf.mxu0
  %v731 = vadd.f32 %v486, %v730
  %v732 = vpop.f32.mrf.mxu0
  %733 = vmatprep.mubr.f32.mxu0 0.0
  %734 = vmatmul.mubr.f32.gmra.mxu0 %v540
  %v735 = vpop.f32.mrf.mxu0
  %v736 = vadd.f32 %v486, %v735
  %v737 = vpop.f32.mrf.mxu0
  %738 = vmatprep.mubr.f32.mxu0 0.0
  %739 = vmatmul.mubr.f32.gmra.mxu0 %v543
  %v740 = vpop.f32.mrf.mxu0
  %v741 = vadd.f32 %v486, %v740
  %v742 = vpop.f32.mrf.mxu0
  %743 = vmatprep.mubr.f32.mxu0 0.0
  %744 = vmatmul.mubr.f32.gmra.mxu0 %v546
  %v745 = vpop.f32.mrf.mxu0
  %v746 = vadd.f32 %v486, %v745
  %v747 = vpop.f32.mrf.mxu0
  %748 = vmatprep.mubr.f32.mxu0 0.0
  %749 = vmatmul.mubr.f32.gmra.mxu0 %v549
  %v750 = vpop.f32.mrf.mxu0
  %v751 = vadd.f32 %v486, %v750
  %v752 = vpop.f32.mrf.mxu0
  %753 = vmatprep.mubr.f32.mxu0 0.0
  %754 = vmatmul.mubr.f32.gmra.mxu0 %v552
  %v755 = vpop.f32.mrf.mxu0
  %v756 = vadd.f32 %v486, %v755
  %v757 = vpop.f32.mrf.mxu0
  %758 = vmatprep.mubr.f32.mxu0 0.0
  %759 = vmatmul.mubr.f32.gmra.mxu0 %v555
  %v760 = vpop.f32.mrf.mxu0
  %v761 = vadd.f32 %v486, %v760
  %v762 = vpop.f32.mrf.mxu0
  %763 = vmatprep.mubr.f32.mxu0 0.0
  %764 = vmatmul.mubr.f32.gmra.mxu0 %v558
  %v765 = vpop.f32.mrf.mxu0
  %v766 = vadd.f32 %v486, %v765
  %v767 = vpop.f32.mrf.mxu0
  %768 = vmatprep.mubr.f32.mxu0 0.0
  %769 = vmatmul.mubr.f32.gmra.mxu0 %v561
  %v770 = vpop.f32.mrf.mxu0
  %v771 = vadd.f32 %v486, %v770
  %v772 = vpop.f32.mrf.mxu0
  %773 = vmatprep.mubr.f32.mxu0 0.0
  %774 = vmatmul.mubr.f32.gmra.mxu0 %v564
  %v775 = vpop.f32.mrf.mxu0
  %v776 = vadd.f32 %v486, %v775
  %v777 = vpop.f32.mrf.mxu0
  %778 = vmatprep.mubr.f32.mxu0 0.0
  %779 = vmatmul.mubr.f32.gmra.mxu0 %v567
  %v780 = vpop.f32.mrf.mxu0
  %v781 = vadd.f32 %v486, %v780
  %v782 = vpop.f32.mrf.mxu0
  %783 = vmatprep.mubr.f32.mxu0 0.0
  %784 = vmatmul.mubr.f32.gmra.mxu0 %v570
  %v785 = vpop.f32.mrf.mxu0
  %v786 = vadd.f32 %v486, %v785
  %v787 = vpop.f32.mrf.mxu0
  %788 = vmatprep.mubr.f32.mxu0 0.0
  %789 = vmatmul.mubr.f32.gmra.mxu0 %v573
  %v790 = vpop.f32.mrf.mxu0
  %v791 = vadd.f32 %v486, %v790
  %v792 = vpop.f32.mrf.mxu0
  %793 = vmatprep.mubr.f32.mxu0 0.0
  %794 = vmatmul.mubr.f32.gmra.mxu0 %v576
  %v795 = vpop.f32.mrf.mxu0
  %v796 = vadd.f32 %v486, %v795
  %v797 = vpop.f32.mrf.mxu0
  %798 = vmatprep.mubr.f32.mxu0 0.0
  %799 = vmatmul.mubr.f32.gmra.mxu0 %v579
  %v800 = vpop.f32.mrf.mxu0
  %v801 = vadd.f32 %v486, %v800
  %v802 = vpop.f32.mrf.mxu0
  %803 = vmatprep.mubr.f32.mxu0 0.0
  %804 = vmatmul.mubr.f32.gmra.mxu0 %v582
  %v805 = vpop.f32.mrf.mxu0
  %v806 = vadd.f32 %v486, %v805
  %v807 = vpop.f32.mrf.mxu0
  %808 = vdwg.mxu0
  %vm809 = vcmp.gt.f32.partialorder %v651, 0.0
  %vm810 = vcmp.gt.f32.partialorder %v656, 0.0
  %vm811 = vcmp.gt.f32.partialorder %v661, 0.0
  %vm812 = vcmp.gt.f32.partialorder %v666, 0.0
  %vm813 = vcmp.gt.f32.partialorder %v671, 0.0
  %vm814 = vcmp.gt.f32.partialorder %v676, 0.0
  %vm815 = vcmp.gt.f32.partialorder %v681, 0.0
  %vm816 = vcmp.gt.f32.partialorder %v686, 0.0
  %vm817 = vcmp.gt.f32.partialorder %v691, 0.0
  %vm818 = vcmp.gt.f32.partialorder %v696, 0.0
  %vm819 = vcmp.gt.f32.partialorder %v701, 0.0
  %vm820 = vcmp.gt.f32.partialorder %v706, 0.0
  %vm821 = vcmp.gt.f32.partialorder %v711, 0.0
  %vm822 = vcmp.gt.f32.partialorder %v716, 0.0
  %vm823 = vcmp.gt.f32.partialorder %v721, 0.0
  %vm824 = vcmp.gt.f32.partialorder %v726, 0.0
  %vm825 = vcmp.gt.f32.partialorder %v731, 0.0
  %vm826 = vcmp.gt.f32.partialorder %v736, 0.0
  %vm827 = vcmp.gt.f32.partialorder %v741, 0.0
  %vm828 = vcmp.gt.f32.partialorder %v746, 0.0
  %vm829 = vcmp.gt.f32.partialorder %v751, 0.0
  %vm830 = vcmp.gt.f32.partialorder %v756, 0.0
  %vm831 = vcmp.gt.f32.partialorder %v761, 0.0
  %vm832 = vcmp.gt.f32.partialorder %v766, 0.0
  %vm833 = vcmp.gt.f32.partialorder %v771, 0.0
  %vm834 = vcmp.gt.f32.partialorder %v776, 0.0
  %vm835 = vcmp.gt.f32.partialorder %v781, 0.0
  %vm836 = vcmp.gt.f32.partialorder %v786, 0.0
  %vm837 = vcmp.gt.f32.partialorder %v791, 0.0
  %vm838 = vcmp.gt.f32.partialorder %v796, 0.0
  %vm839 = vcmp.gt.f32.partialorder %v801, 0.0
  %vm840 = vcmp.gt.f32.partialorder %v806, 0.0
  %v841 = vmul.f32 %v651, 0.2
  %v842 = vmul.f32 %v656, 0.2
  %v843 = vmul.f32 %v661, 0.2
  %v844 = vmul.f32 %v666, 0.2
  %v845 = vmul.f32 %v671, 0.2
  %v846 = vmul.f32 %v676, 0.2
  %v847 = vmul.f32 %v681, 0.2
  %v848 = vmul.f32 %v686, 0.2
  %v849 = vmul.f32 %v691, 0.2
  %v850 = vmul.f32 %v696, 0.2
  %v851 = vmul.f32 %v701, 0.2
  %v852 = vmul.f32 %v706, 0.2
  %v853 = vmul.f32 %v711, 0.2
  %v854 = vmul.f32 %v716, 0.2
  %v855 = vmul.f32 %v721, 0.2
  %v856 = vmul.f32 %v726, 0.2
  %v857 = vmul.f32 %v731, 0.2
  %v858 = vmul.f32 %v736, 0.2
  %v859 = vmul.f32 %v741, 0.2
  %v860 = vmul.f32 %v746, 0.2
  %v861 = vmul.f32 %v751, 0.2
  %v862 = vmul.f32 %v756, 0.2
  %v863 = vmul.f32 %v761, 0.2
  %v864 = vmul.f32 %v766, 0.2
  %v865 = vmul.f32 %v771, 0.2
  %v866 = vmul.f32 %v776, 0.2
  %v867 = vmul.f32 %v781, 0.2
  %v868 = vmul.f32 %v786, 0.2
  %v869 = vmul.f32 %v791, 0.2
  %v870 = vmul.f32 %v796, 0.2
  %v871 = vmul.f32 %v801, 0.2
  %v872 = vmul.f32 %v806, 0.2
  %v873 = vsel %vm809, %v651, %v841
  %v874 = vsel %vm810, %v656, %v842
  %v875 = vsel %vm811, %v661, %v843
  %v876 = vsel %vm812, %v666, %v844
  %v877 = vsel %vm813, %v671, %v845
  %v878 = vsel %vm814, %v676, %v846
  %v879 = vsel %vm815, %v681, %v847
  %v880 = vsel %vm816, %v686, %v848
  %v881 = vsel %vm817, %v691, %v849
  %v882 = vsel %vm818, %v696, %v850
  %v883 = vsel %vm819, %v701, %v851
  %v884 = vsel %vm820, %v706, %v852
  %v885 = vsel %vm821, %v711, %v853
  %v886 = vsel %vm822, %v716, %v854
  %v887 = vsel %vm823, %v721, %v855
  %v888 = vsel %vm824, %v726, %v856
  %v889 = vsel %vm825, %v731, %v857
  %v890 = vsel %vm826, %v736, %v858
  %v891 = vsel %vm827, %v741, %v859
  %v892 = vsel %vm828, %v746, %v860
  %v893 = vsel %vm829, %v751, %v861
  %v894 = vsel %vm830, %v756, %v862
  %v895 = vsel %vm831, %v761, %v863
  %v896 = vsel %vm832, %v766, %v864
  %v897 = vsel %vm833, %v771, %v865
  %v898 = vsel %vm834, %v776, %v866
  %v899 = vsel %vm835, %v781, %v867
  %v900 = vsel %vm836, %v786, %v868
  %v901 = vsel %vm837, %v791, %v869
  %v902 = vsel %vm838, %v796, %v870
  %v903 = vsel %vm839, %v801, %v871
  %v904 = vsel %vm840, %v806, %v872
  %s905 = scalar_lea.vmem %s1, 64
  %v906 = vld [vmem:[%s905] sm:$0xff]
  %v907 = vld [vmem:[%s905 + $0x8] sm:$0xff]
  %v908 = vld [vmem:[%s905 + $0x10] sm:$0xff]
  %v909 = vld [vmem:[%s905 + $0x18] sm:$0xff]
  %s910 = scalar_lea.vmem %s2, 2
  %v911 = vld [vmem:[%s910] sm:$0x1]
  %v913 = vlaneseq
  %v914 = vshrl.u32 %v913, 7
  %v915 = vsub.s32 0, %v914
  %v916 = vrot.slane %v911, %v915
  %v919 = vsel %vm57, %v873, 0
  %v922 = vsel %vm57, %v874, 0
  %v925 = vsel %vm57, %v875, 0
  %v928 = vsel %vm57, %v876, 0
  %v931 = vsel %vm57, %v877, 0
  %v934 = vsel %vm57, %v878, 0
  %v937 = vsel %vm57, %v879, 0
  %v940 = vsel %vm57, %v880, 0
  %v943 = vsel %vm57, %v881, 0
  %v946 = vsel %vm57, %v882, 0
  %v949 = vsel %vm57, %v883, 0
  %v952 = vsel %vm57, %v884, 0
  %v955 = vsel %vm57, %v885, 0
  %v958 = vsel %vm57, %v886, 0
  %v961 = vsel %vm57, %v887, 0
  %v964 = vsel %vm57, %v888, 0
  %v967 = vsel %vm57, %v889, 0
  %v970 = vsel %vm57, %v890, 0
  %v973 = vsel %vm57, %v891, 0
  %v976 = vsel %vm57, %v892, 0
  %v979 = vsel %vm57, %v893, 0
  %v982 = vsel %vm57, %v894, 0
  %v985 = vsel %vm57, %v895, 0
  %v988 = vsel %vm57, %v896, 0
  %v991 = vsel %vm57, %v897, 0
  %v994 = vsel %vm57, %v898, 0
  %v997 = vsel %vm57, %v899, 0
  %v1000 = vsel %vm57, %v900, 0
  %v1003 = vsel %vm57, %v901, 0
  %v1006 = vsel %vm57, %v902, 0
  %v1009 = vsel %vm57, %v903, 0
  %v1012 = vsel %vm57, %v904, 0
  %1014 = vmatprep.subr.mxu0 0.0
  %1015 = vmatpush1.msra.mxu0 0.0
  %1016 = vmatprep.subr.mxu0 0.0
  %1017 = vmatpush1.msra.mxu0 0.0
  %1018 = vmatprep.subr.mxu0 0.0
  %1019 = vmatpush1.msra.mxu0 0.0
  %1020 = vmatprep.subr.mxu0 0.0
  %1021 = vmatpush1.msra.mxu0 0.0
  %1022 = vmatprep.subr.mxu0 0.0
  %1023 = vmatpush1.msra.mxu0 0.0
  %1024 = vmatprep.subr.mxu0 0.0
  %1025 = vmatpush1.msra.mxu0 0.0
  %1026 = vmatprep.subr.mxu0 0.0
  %1027 = vmatpush1.msra.mxu0 0.0
  %1028 = vmatprep.subr.mxu0 0.0
  %1029 = vmatpush1.msra.mxu0 0.0
  %1030 = vmatprep.subr.mxu0 0.0
  %1031 = vmatpush1.msra.mxu0 0.0
  %1032 = vmatprep.subr.mxu0 0.0
  %1033 = vmatpush1.msra.mxu0 0.0
  %1034 = vmatprep.subr.mxu0 0.0
  %1035 = vmatpush1.msra.mxu0 0.0
  %1036 = vmatprep.subr.mxu0 0.0
  %1037 = vmatpush1.msra.mxu0 0.0
  %1038 = vmatprep.subr.mxu0 0.0
  %1039 = vmatpush1.msra.mxu0 %v909
  %1040 = vmatprep.subr.mxu0 0.0
  %1041 = vmatpush1.msra.mxu0 %v908
  %1042 = vmatprep.subr.mxu0 0.0
  %1043 = vmatpush1.msra.mxu0 %v907
  %1044 = vmatprep.subr.mxu0 0.0
  %1045 = vmatpush1.msra.mxu0 %v906
  %1046 = vmatprep.subr.mxu0 0.0
  %1047 = vmatpush2.msra.mxu0 0.0
  %1048 = vmatprep.subr.mxu0 0.0
  %1049 = vmatpush2.msra.mxu0 0.0
  %1050 = vmatprep.subr.mxu0 0.0
  %1051 = vmatpush2.msra.mxu0 0.0
  %1052 = vmatprep.subr.mxu0 0.0
  %1053 = vmatpush2.msra.mxu0 0.0
  %1054 = vmatprep.subr.mxu0 0.0
  %1055 = vmatpush2.msra.mxu0 0.0
  %1056 = vmatprep.subr.mxu0 0.0
  %1057 = vmatpush2.msra.mxu0 0.0
  %1058 = vmatprep.subr.mxu0 0.0
  %1059 = vmatpush2.msra.mxu0 0.0
  %1060 = vmatprep.subr.mxu0 0.0
  %1061 = vmatpush2.msra.mxu0 0.0
  %1062 = vmatprep.subr.mxu0 0.0
  %1063 = vmatpush2.msra.mxu0 0.0
  %1064 = vmatprep.subr.mxu0 0.0
  %1065 = vmatpush2.msra.mxu0 0.0
  %1066 = vmatprep.subr.mxu0 0.0
  %1067 = vmatpush2.msra.mxu0 0.0
  %1068 = vmatprep.subr.mxu0 0.0
  %1069 = vmatpush2.msra.mxu0 0.0
  %1070 = vmatprep.subr.mxu0 0.0
  %1071 = vmatpush2.msra.mxu0 0.0
  %1072 = vmatprep.subr.mxu0 0.0
  %1073 = vmatpush2.msra.mxu0 0.0
  %1074 = vmatprep.subr.mxu0 0.0
  %1075 = vmatpush2.msra.mxu0 0.0
  %1076 = vmatprep.subr.mxu0 0.0
  %1077 = vmatpush2.msra.mxu0 0.0
  %1078 = vmatprep.mubr.f32.mxu0 0.0
  %1079 = vmatmul.mubr.f32.gmra.mxu0 %v919
  %v1080 = vpop.f32.mrf.mxu0
  %v1081 = vadd.f32 %v916, %v1080
  %v1082 = vpop.f32.mrf.mxu0
  %1083 = vmatprep.mubr.f32.mxu0 0.0
  %1084 = vmatmul.mubr.f32.gmra.mxu0 %v922
  %v1085 = vpop.f32.mrf.mxu0
  %v1086 = vadd.f32 %v916, %v1085
  %v1087 = vpop.f32.mrf.mxu0
  %1088 = vmatprep.mubr.f32.mxu0 0.0
  %1089 = vmatmul.mubr.f32.gmra.mxu0 %v925
  %v1090 = vpop.f32.mrf.mxu0
  %v1091 = vadd.f32 %v916, %v1090
  %v1092 = vpop.f32.mrf.mxu0
  %1093 = vmatprep.mubr.f32.mxu0 0.0
  %1094 = vmatmul.mubr.f32.gmra.mxu0 %v928
  %v1095 = vpop.f32.mrf.mxu0
  %v1096 = vadd.f32 %v916, %v1095
  %v1097 = vpop.f32.mrf.mxu0
  %1098 = vmatprep.mubr.f32.mxu0 0.0
  %1099 = vmatmul.mubr.f32.gmra.mxu0 %v931
  %v1100 = vpop.f32.mrf.mxu0
  %v1101 = vadd.f32 %v916, %v1100
  %v1102 = vpop.f32.mrf.mxu0
  %1103 = vmatprep.mubr.f32.mxu0 0.0
  %1104 = vmatmul.mubr.f32.gmra.mxu0 %v934
  %v1105 = vpop.f32.mrf.mxu0
  %v1106 = vadd.f32 %v916, %v1105
  %v1107 = vpop.f32.mrf.mxu0
  %1108 = vmatprep.mubr.f32.mxu0 0.0
  %1109 = vmatmul.mubr.f32.gmra.mxu0 %v937
  %v1110 = vpop.f32.mrf.mxu0
  %v1111 = vadd.f32 %v916, %v1110
  %v1112 = vpop.f32.mrf.mxu0
  %1113 = vmatprep.mubr.f32.mxu0 0.0
  %1114 = vmatmul.mubr.f32.gmra.mxu0 %v940
  %v1115 = vpop.f32.mrf.mxu0
  %v1116 = vadd.f32 %v916, %v1115
  %v1117 = vpop.f32.mrf.mxu0
  %1118 = vmatprep.mubr.f32.mxu0 0.0
  %1119 = vmatmul.mubr.f32.gmra.mxu0 %v943
  %v1120 = vpop.f32.mrf.mxu0
  %v1121 = vadd.f32 %v916, %v1120
  %v1122 = vpop.f32.mrf.mxu0
  %1123 = vmatprep.mubr.f32.mxu0 0.0
  %1124 = vmatmul.mubr.f32.gmra.mxu0 %v946
  %v1125 = vpop.f32.mrf.mxu0
  %v1126 = vadd.f32 %v916, %v1125
  %v1127 = vpop.f32.mrf.mxu0
  %1128 = vmatprep.mubr.f32.mxu0 0.0
  %1129 = vmatmul.mubr.f32.gmra.mxu0 %v949
  %v1130 = vpop.f32.mrf.mxu0
  %v1131 = vadd.f32 %v916, %v1130
  %v1132 = vpop.f32.mrf.mxu0
  %1133 = vmatprep.mubr.f32.mxu0 0.0
  %1134 = vmatmul.mubr.f32.gmra.mxu0 %v952
  %v1135 = vpop.f32.mrf.mxu0
  %v1136 = vadd.f32 %v916, %v1135
  %v1137 = vpop.f32.mrf.mxu0
  %1138 = vmatprep.mubr.f32.mxu0 0.0
  %1139 = vmatmul.mubr.f32.gmra.mxu0 %v955
  %v1140 = vpop.f32.mrf.mxu0
  %v1141 = vadd.f32 %v916, %v1140
  %v1142 = vpop.f32.mrf.mxu0
  %1143 = vmatprep.mubr.f32.mxu0 0.0
  %1144 = vmatmul.mubr.f32.gmra.mxu0 %v958
  %v1145 = vpop.f32.mrf.mxu0
  %v1146 = vadd.f32 %v916, %v1145
  %v1147 = vpop.f32.mrf.mxu0
  %1148 = vmatprep.mubr.f32.mxu0 0.0
  %1149 = vmatmul.mubr.f32.gmra.mxu0 %v961
  %v1150 = vpop.f32.mrf.mxu0
  %v1151 = vadd.f32 %v916, %v1150
  %v1152 = vpop.f32.mrf.mxu0
  %1153 = vmatprep.mubr.f32.mxu0 0.0
  %1154 = vmatmul.mubr.f32.gmra.mxu0 %v964
  %v1155 = vpop.f32.mrf.mxu0
  %v1156 = vadd.f32 %v916, %v1155
  %v1157 = vpop.f32.mrf.mxu0
  %1158 = vmatprep.mubr.f32.mxu0 0.0
  %1159 = vmatmul.mubr.f32.gmra.mxu0 %v967
  %v1160 = vpop.f32.mrf.mxu0
  %v1161 = vadd.f32 %v916, %v1160
  %v1162 = vpop.f32.mrf.mxu0
  %1163 = vmatprep.mubr.f32.mxu0 0.0
  %1164 = vmatmul.mubr.f32.gmra.mxu0 %v970
  %v1165 = vpop.f32.mrf.mxu0
  %v1166 = vadd.f32 %v916, %v1165
  %v1167 = vpop.f32.mrf.mxu0
  %1168 = vmatprep.mubr.f32.mxu0 0.0
  %1169 = vmatmul.mubr.f32.gmra.mxu0 %v973
  %v1170 = vpop.f32.mrf.mxu0
  %v1171 = vadd.f32 %v916, %v1170
  %v1172 = vpop.f32.mrf.mxu0
  %1173 = vmatprep.mubr.f32.mxu0 0.0
  %1174 = vmatmul.mubr.f32.gmra.mxu0 %v976
  %v1175 = vpop.f32.mrf.mxu0
  %v1176 = vadd.f32 %v916, %v1175
  %v1177 = vpop.f32.mrf.mxu0
  %1178 = vmatprep.mubr.f32.mxu0 0.0
  %1179 = vmatmul.mubr.f32.gmra.mxu0 %v979
  %v1180 = vpop.f32.mrf.mxu0
  %v1181 = vadd.f32 %v916, %v1180
  %v1182 = vpop.f32.mrf.mxu0
  %1183 = vmatprep.mubr.f32.mxu0 0.0
  %1184 = vmatmul.mubr.f32.gmra.mxu0 %v982
  %v1185 = vpop.f32.mrf.mxu0
  %v1186 = vadd.f32 %v916, %v1185
  %v1187 = vpop.f32.mrf.mxu0
  %1188 = vmatprep.mubr.f32.mxu0 0.0
  %1189 = vmatmul.mubr.f32.gmra.mxu0 %v985
  %v1190 = vpop.f32.mrf.mxu0
  %v1191 = vadd.f32 %v916, %v1190
  %v1192 = vpop.f32.mrf.mxu0
  %1193 = vmatprep.mubr.f32.mxu0 0.0
  %1194 = vmatmul.mubr.f32.gmra.mxu0 %v988
  %v1195 = vpop.f32.mrf.mxu0
  %v1196 = vadd.f32 %v916, %v1195
  %v1197 = vpop.f32.mrf.mxu0
  %1198 = vmatprep.mubr.f32.mxu0 0.0
  %1199 = vmatmul.mubr.f32.gmra.mxu0 %v991
  %v1200 = vpop.f32.mrf.mxu0
  %v1201 = vadd.f32 %v916, %v1200
  %v1202 = vpop.f32.mrf.mxu0
  %1203 = vmatprep.mubr.f32.mxu0 0.0
  %1204 = vmatmul.mubr.f32.gmra.mxu0 %v994
  %v1205 = vpop.f32.mrf.mxu0
  %v1206 = vadd.f32 %v916, %v1205
  %v1207 = vpop.f32.mrf.mxu0
  %1208 = vmatprep.mubr.f32.mxu0 0.0
  %1209 = vmatmul.mubr.f32.gmra.mxu0 %v997
  %v1210 = vpop.f32.mrf.mxu0
  %v1211 = vadd.f32 %v916, %v1210
  %v1212 = vpop.f32.mrf.mxu0
  %1213 = vmatprep.mubr.f32.mxu0 0.0
  %1214 = vmatmul.mubr.f32.gmra.mxu0 %v1000
  %v1215 = vpop.f32.mrf.mxu0
  %v1216 = vadd.f32 %v916, %v1215
  %v1217 = vpop.f32.mrf.mxu0
  %1218 = vmatprep.mubr.f32.mxu0 0.0
  %1219 = vmatmul.mubr.f32.gmra.mxu0 %v1003
  %v1220 = vpop.f32.mrf.mxu0
  %v1221 = vadd.f32 %v916, %v1220
  %v1222 = vpop.f32.mrf.mxu0
  %1223 = vmatprep.mubr.f32.mxu0 0.0
  %1224 = vmatmul.mubr.f32.gmra.mxu0 %v1006
  %v1225 = vpop.f32.mrf.mxu0
  %v1226 = vadd.f32 %v916, %v1225
  %v1227 = vpop.f32.mrf.mxu0
  %1228 = vmatprep.mubr.f32.mxu0 0.0
  %1229 = vmatmul.mubr.f32.gmra.mxu0 %v1009
  %v1230 = vpop.f32.mrf.mxu0
  %v1231 = vadd.f32 %v916, %v1230
  %v1232 = vpop.f32.mrf.mxu0
  %1233 = vmatprep.mubr.f32.mxu0 0.0
  %1234 = vmatmul.mubr.f32.gmra.mxu0 %v1012
  %v1235 = vpop.f32.mrf.mxu0
  %v1236 = vadd.f32 %v916, %v1235
  %v1237 = vpop.f32.mrf.mxu0
  %1238 = vdwg.mxu0
  %vm1239 = vcmp.gt.f32.partialorder %v1081, 0.0
  %vm1240 = vcmp.gt.f32.partialorder %v1086, 0.0
  %vm1241 = vcmp.gt.f32.partialorder %v1091, 0.0
  %vm1242 = vcmp.gt.f32.partialorder %v1096, 0.0
  %vm1243 = vcmp.gt.f32.partialorder %v1101, 0.0
  %vm1244 = vcmp.gt.f32.partialorder %v1106, 0.0
  %vm1245 = vcmp.gt.f32.partialorder %v1111, 0.0
  %vm1246 = vcmp.gt.f32.partialorder %v1116, 0.0
  %vm1247 = vcmp.gt.f32.partialorder %v1121, 0.0
  %vm1248 = vcmp.gt.f32.partialorder %v1126, 0.0
  %vm1249 = vcmp.gt.f32.partialorder %v1131, 0.0
  %vm1250 = vcmp.gt.f32.partialorder %v1136, 0.0
  %vm1251 = vcmp.gt.f32.partialorder %v1141, 0.0
  %vm1252 = vcmp.gt.f32.partialorder %v1146, 0.0
  %vm1253 = vcmp.gt.f32.partialorder %v1151, 0.0
  %vm1254 = vcmp.gt.f32.partialorder %v1156, 0.0
  %vm1255 = vcmp.gt.f32.partialorder %v1161, 0.0
  %vm1256 = vcmp.gt.f32.partialorder %v1166, 0.0
  %vm1257 = vcmp.gt.f32.partialorder %v1171, 0.0
  %vm1258 = vcmp.gt.f32.partialorder %v1176, 0.0
  %vm1259 = vcmp.gt.f32.partialorder %v1181, 0.0
  %vm1260 = vcmp.gt.f32.partialorder %v1186, 0.0
  %vm1261 = vcmp.gt.f32.partialorder %v1191, 0.0
  %vm1262 = vcmp.gt.f32.partialorder %v1196, 0.0
  %vm1263 = vcmp.gt.f32.partialorder %v1201, 0.0
  %vm1264 = vcmp.gt.f32.partialorder %v1206, 0.0
  %vm1265 = vcmp.gt.f32.partialorder %v1211, 0.0
  %vm1266 = vcmp.gt.f32.partialorder %v1216, 0.0
  %vm1267 = vcmp.gt.f32.partialorder %v1221, 0.0
  %vm1268 = vcmp.gt.f32.partialorder %v1226, 0.0
  %vm1269 = vcmp.gt.f32.partialorder %v1231, 0.0
  %vm1270 = vcmp.gt.f32.partialorder %v1236, 0.0
  %v1271 = vmul.f32 %v1081, 0.2
  %v1272 = vmul.f32 %v1086, 0.2
  %v1273 = vmul.f32 %v1091, 0.2
  %v1274 = vmul.f32 %v1096, 0.2
  %v1275 = vmul.f32 %v1101, 0.2
  %v1276 = vmul.f32 %v1106, 0.2
  %v1277 = vmul.f32 %v1111, 0.2
  %v1278 = vmul.f32 %v1116, 0.2
  %v1279 = vmul.f32 %v1121, 0.2
  %v1280 = vmul.f32 %v1126, 0.2
  %v1281 = vmul.f32 %v1131, 0.2
  %v1282 = vmul.f32 %v1136, 0.2
  %v1283 = vmul.f32 %v1141, 0.2
  %v1284 = vmul.f32 %v1146, 0.2
  %v1285 = vmul.f32 %v1151, 0.2
  %v1286 = vmul.f32 %v1156, 0.2
  %v1287 = vmul.f32 %v1161, 0.2
  %v1288 = vmul.f32 %v1166, 0.2
  %v1289 = vmul.f32 %v1171, 0.2
  %v1290 = vmul.f32 %v1176, 0.2
  %v1291 = vmul.f32 %v1181, 0.2
  %v1292 = vmul.f32 %v1186, 0.2
  %v1293 = vmul.f32 %v1191, 0.2
  %v1294 = vmul.f32 %v1196, 0.2
  %v1295 = vmul.f32 %v1201, 0.2
  %v1296 = vmul.f32 %v1206, 0.2
  %v1297 = vmul.f32 %v1211, 0.2
  %v1298 = vmul.f32 %v1216, 0.2
  %v1299 = vmul.f32 %v1221, 0.2
  %v1300 = vmul.f32 %v1226, 0.2
  %v1301 = vmul.f32 %v1231, 0.2
  %v1302 = vmul.f32 %v1236, 0.2
  %v1303 = vsel %vm1239, %v1081, %v1271
  %v1304 = vsel %vm1240, %v1086, %v1272
  %v1305 = vsel %vm1241, %v1091, %v1273
  %v1306 = vsel %vm1242, %v1096, %v1274
  %v1307 = vsel %vm1243, %v1101, %v1275
  %v1308 = vsel %vm1244, %v1106, %v1276
  %v1309 = vsel %vm1245, %v1111, %v1277
  %v1310 = vsel %vm1246, %v1116, %v1278
  %v1311 = vsel %vm1247, %v1121, %v1279
  %v1312 = vsel %vm1248, %v1126, %v1280
  %v1313 = vsel %vm1249, %v1131, %v1281
  %v1314 = vsel %vm1250, %v1136, %v1282
  %v1315 = vsel %vm1251, %v1141, %v1283
  %v1316 = vsel %vm1252, %v1146, %v1284
  %v1317 = vsel %vm1253, %v1151, %v1285
  %v1318 = vsel %vm1254, %v1156, %v1286
  %v1319 = vsel %vm1255, %v1161, %v1287
  %v1320 = vsel %vm1256, %v1166, %v1288
  %v1321 = vsel %vm1257, %v1171, %v1289
  %v1322 = vsel %vm1258, %v1176, %v1290
  %v1323 = vsel %vm1259, %v1181, %v1291
  %v1324 = vsel %vm1260, %v1186, %v1292
  %v1325 = vsel %vm1261, %v1191, %v1293
  %v1326 = vsel %vm1262, %v1196, %v1294
  %v1327 = vsel %vm1263, %v1201, %v1295
  %v1328 = vsel %vm1264, %v1206, %v1296
  %v1329 = vsel %vm1265, %v1211, %v1297
  %v1330 = vsel %vm1266, %v1216, %v1298
  %v1331 = vsel %vm1267, %v1221, %v1299
  %v1332 = vsel %vm1268, %v1226, %v1300
  %v1333 = vsel %vm1269, %v1231, %v1301
  %v1334 = vsel %vm1270, %v1236, %v1302
  %s1335 = scalar_lea.vmem %s1, 96
  %v1336 = vld [vmem:[%s1335] sm:$0xff]
  %v1337 = vld [vmem:[%s1335 + $0x8] sm:$0xff]
  %v1338 = vld [vmem:[%s1335 + $0x10] sm:$0xff]
  %v1339 = vld [vmem:[%s1335 + $0x18] sm:$0xff]
  %s1340 = scalar_lea.vmem %s2, 3
  %v1341 = vld [vmem:[%s1340] sm:$0x1]
  %v1343 = vlaneseq
  %v1344 = vshrl.u32 %v1343, 7
  %v1345 = vsub.s32 0, %v1344
  %v1346 = vrot.slane %v1341, %v1345
  %v1349 = vsel %vm57, %v1303, 0
  %v1352 = vsel %vm57, %v1304, 0
  %v1355 = vsel %vm57, %v1305, 0
  %v1358 = vsel %vm57, %v1306, 0
  %v1361 = vsel %vm57, %v1307, 0
  %v1364 = vsel %vm57, %v1308, 0
  %v1367 = vsel %vm57, %v1309, 0
  %v1370 = vsel %vm57, %v1310, 0
  %v1373 = vsel %vm57, %v1311, 0
  %v1376 = vsel %vm57, %v1312, 0
  %v1379 = vsel %vm57, %v1313, 0
  %v1382 = vsel %vm57, %v1314, 0
  %v1385 = vsel %vm57, %v1315, 0
  %v1388 = vsel %vm57, %v1316, 0
  %v1391 = vsel %vm57, %v1317, 0
  %v1394 = vsel %vm57, %v1318, 0
  %v1397 = vsel %vm57, %v1319, 0
  %v1400 = vsel %vm57, %v1320, 0
  %v1403 = vsel %vm57, %v1321, 0
  %v1406 = vsel %vm57, %v1322, 0
  %v1409 = vsel %vm57, %v1323, 0
  %v1412 = vsel %vm57, %v1324, 0
  %v1415 = vsel %vm57, %v1325, 0
  %v1418 = vsel %vm57, %v1326, 0
  %v1421 = vsel %vm57, %v1327, 0
  %v1424 = vsel %vm57, %v1328, 0
  %v1427 = vsel %vm57, %v1329, 0
  %v1430 = vsel %vm57, %v1330, 0
  %v1433 = vsel %vm57, %v1331, 0
  %v1436 = vsel %vm57, %v1332, 0
  %v1439 = vsel %vm57, %v1333, 0
  %v1442 = vsel %vm57, %v1334, 0
  %1444 = vmatprep.subr.mxu0 0.0
  %1445 = vmatpush1.msra.mxu0 0.0
  %1446 = vmatprep.subr.mxu0 0.0
  %1447 = vmatpush1.msra.mxu0 0.0
  %1448 = vmatprep.subr.mxu0 0.0
  %1449 = vmatpush1.msra.mxu0 0.0
  %1450 = vmatprep.subr.mxu0 0.0
  %1451 = vmatpush1.msra.mxu0 0.0
  %1452 = vmatprep.subr.mxu0 0.0
  %1453 = vmatpush1.msra.mxu0 0.0
  %1454 = vmatprep.subr.mxu0 0.0
  %1455 = vmatpush1.msra.mxu0 0.0
  %1456 = vmatprep.subr.mxu0 0.0
  %1457 = vmatpush1.msra.mxu0 0.0
  %1458 = vmatprep.subr.mxu0 0.0
  %1459 = vmatpush1.msra.mxu0 0.0
  %1460 = vmatprep.subr.mxu0 0.0
  %1461 = vmatpush1.msra.mxu0 0.0
  %1462 = vmatprep.subr.mxu0 0.0
  %1463 = vmatpush1.msra.mxu0 0.0
  %1464 = vmatprep.subr.mxu0 0.0
  %1465 = vmatpush1.msra.mxu0 0.0
  %1466 = vmatprep.subr.mxu0 0.0
  %1467 = vmatpush1.msra.mxu0 0.0
  %1468 = vmatprep.subr.mxu0 0.0
  %1469 = vmatpush1.msra.mxu0 %v1339
  %1470 = vmatprep.subr.mxu0 0.0
  %1471 = vmatpush1.msra.mxu0 %v1338
  %1472 = vmatprep.subr.mxu0 0.0
  %1473 = vmatpush1.msra.mxu0 %v1337
  %1474 = vmatprep.subr.mxu0 0.0
  %1475 = vmatpush1.msra.mxu0 %v1336
  %1476 = vmatprep.subr.mxu0 0.0
  %1477 = vmatpush2.msra.mxu0 0.0
  %1478 = vmatprep.subr.mxu0 0.0
  %1479 = vmatpush2.msra.mxu0 0.0
  %1480 = vmatprep.subr.mxu0 0.0
  %1481 = vmatpush2.msra.mxu0 0.0
  %1482 = vmatprep.subr.mxu0 0.0
  %1483 = vmatpush2.msra.mxu0 0.0
  %1484 = vmatprep.subr.mxu0 0.0
  %1485 = vmatpush2.msra.mxu0 0.0
  %1486 = vmatprep.subr.mxu0 0.0
  %1487 = vmatpush2.msra.mxu0 0.0
  %1488 = vmatprep.subr.mxu0 0.0
  %1489 = vmatpush2.msra.mxu0 0.0
  %1490 = vmatprep.subr.mxu0 0.0
  %1491 = vmatpush2.msra.mxu0 0.0
  %1492 = vmatprep.subr.mxu0 0.0
  %1493 = vmatpush2.msra.mxu0 0.0
  %1494 = vmatprep.subr.mxu0 0.0
  %1495 = vmatpush2.msra.mxu0 0.0
  %1496 = vmatprep.subr.mxu0 0.0
  %1497 = vmatpush2.msra.mxu0 0.0
  %1498 = vmatprep.subr.mxu0 0.0
  %1499 = vmatpush2.msra.mxu0 0.0
  %1500 = vmatprep.subr.mxu0 0.0
  %1501 = vmatpush2.msra.mxu0 0.0
  %1502 = vmatprep.subr.mxu0 0.0
  %1503 = vmatpush2.msra.mxu0 0.0
  %1504 = vmatprep.subr.mxu0 0.0
  %1505 = vmatpush2.msra.mxu0 0.0
  %1506 = vmatprep.subr.mxu0 0.0
  %1507 = vmatpush2.msra.mxu0 0.0
  %1508 = vmatprep.mubr.f32.mxu0 0.0
  %1509 = vmatmul.mubr.f32.gmra.mxu0 %v1349
  %v1510 = vpop.f32.mrf.mxu0
  %v1511 = vadd.f32 %v1346, %v1510
  %v1512 = vpop.f32.mrf.mxu0
  %1513 = vmatprep.mubr.f32.mxu0 0.0
  %1514 = vmatmul.mubr.f32.gmra.mxu0 %v1352
  %v1515 = vpop.f32.mrf.mxu0
  %v1516 = vadd.f32 %v1346, %v1515
  %v1517 = vpop.f32.mrf.mxu0
  %1518 = vmatprep.mubr.f32.mxu0 0.0
  %1519 = vmatmul.mubr.f32.gmra.mxu0 %v1355
  %v1520 = vpop.f32.mrf.mxu0
  %v1521 = vadd.f32 %v1346, %v1520
  %v1522 = vpop.f32.mrf.mxu0
  %1523 = vmatprep.mubr.f32.mxu0 0.0
  %1524 = vmatmul.mubr.f32.gmra.mxu0 %v1358
  %v1525 = vpop.f32.mrf.mxu0
  %v1526 = vadd.f32 %v1346, %v1525
  %v1527 = vpop.f32.mrf.mxu0
  %1528 = vmatprep.mubr.f32.mxu0 0.0
  %1529 = vmatmul.mubr.f32.gmra.mxu0 %v1361
  %v1530 = vpop.f32.mrf.mxu0
  %v1531 = vadd.f32 %v1346, %v1530
  %v1532 = vpop.f32.mrf.mxu0
  %1533 = vmatprep.mubr.f32.mxu0 0.0
  %1534 = vmatmul.mubr.f32.gmra.mxu0 %v1364
  %v1535 = vpop.f32.mrf.mxu0
  %v1536 = vadd.f32 %v1346, %v1535
  %v1537 = vpop.f32.mrf.mxu0
  %1538 = vmatprep.mubr.f32.mxu0 0.0
  %1539 = vmatmul.mubr.f32.gmra.mxu0 %v1367
  %v1540 = vpop.f32.mrf.mxu0
  %v1541 = vadd.f32 %v1346, %v1540
  %v1542 = vpop.f32.mrf.mxu0
  %1543 = vmatprep.mubr.f32.mxu0 0.0
  %1544 = vmatmul.mubr.f32.gmra.mxu0 %v1370
  %v1545 = vpop.f32.mrf.mxu0
  %v1546 = vadd.f32 %v1346, %v1545
  %v1547 = vpop.f32.mrf.mxu0
  %1548 = vmatprep.mubr.f32.mxu0 0.0
  %1549 = vmatmul.mubr.f32.gmra.mxu0 %v1373
  %v1550 = vpop.f32.mrf.mxu0
  %v1551 = vadd.f32 %v1346, %v1550
  %v1552 = vpop.f32.mrf.mxu0
  %1553 = vmatprep.mubr.f32.mxu0 0.0
  %1554 = vmatmul.mubr.f32.gmra.mxu0 %v1376
  %v1555 = vpop.f32.mrf.mxu0
  %v1556 = vadd.f32 %v1346, %v1555
  %v1557 = vpop.f32.mrf.mxu0
  %1558 = vmatprep.mubr.f32.mxu0 0.0
  %1559 = vmatmul.mubr.f32.gmra.mxu0 %v1379
  %v1560 = vpop.f32.mrf.mxu0
  %v1561 = vadd.f32 %v1346, %v1560
  %v1562 = vpop.f32.mrf.mxu0
  %1563 = vmatprep.mubr.f32.mxu0 0.0
  %1564 = vmatmul.mubr.f32.gmra.mxu0 %v1382
  %v1565 = vpop.f32.mrf.mxu0
  %v1566 = vadd.f32 %v1346, %v1565
  %v1567 = vpop.f32.mrf.mxu0
  %1568 = vmatprep.mubr.f32.mxu0 0.0
  %1569 = vmatmul.mubr.f32.gmra.mxu0 %v1385
  %v1570 = vpop.f32.mrf.mxu0
  %v1571 = vadd.f32 %v1346, %v1570
  %v1572 = vpop.f32.mrf.mxu0
  %1573 = vmatprep.mubr.f32.mxu0 0.0
  %1574 = vmatmul.mubr.f32.gmra.mxu0 %v1388
  %v1575 = vpop.f32.mrf.mxu0
  %v1576 = vadd.f32 %v1346, %v1575
  %v1577 = vpop.f32.mrf.mxu0
  %1578 = vmatprep.mubr.f32.mxu0 0.0
  %1579 = vmatmul.mubr.f32.gmra.mxu0 %v1391
  %v1580 = vpop.f32.mrf.mxu0
  %v1581 = vadd.f32 %v1346, %v1580
  %v1582 = vpop.f32.mrf.mxu0
  %1583 = vmatprep.mubr.f32.mxu0 0.0
  %1584 = vmatmul.mubr.f32.gmra.mxu0 %v1394
  %v1585 = vpop.f32.mrf.mxu0
  %v1586 = vadd.f32 %v1346, %v1585
  %v1587 = vpop.f32.mrf.mxu0
  %1588 = vmatprep.mubr.f32.mxu0 0.0
  %1589 = vmatmul.mubr.f32.gmra.mxu0 %v1397
  %v1590 = vpop.f32.mrf.mxu0
  %v1591 = vadd.f32 %v1346, %v1590
  %v1592 = vpop.f32.mrf.mxu0
  %1593 = vmatprep.mubr.f32.mxu0 0.0
  %1594 = vmatmul.mubr.f32.gmra.mxu0 %v1400
  %v1595 = vpop.f32.mrf.mxu0
  %v1596 = vadd.f32 %v1346, %v1595
  %v1597 = vpop.f32.mrf.mxu0
  %1598 = vmatprep.mubr.f32.mxu0 0.0
  %1599 = vmatmul.mubr.f32.gmra.mxu0 %v1403
  %v1600 = vpop.f32.mrf.mxu0
  %v1601 = vadd.f32 %v1346, %v1600
  %v1602 = vpop.f32.mrf.mxu0
  %1603 = vmatprep.mubr.f32.mxu0 0.0
  %1604 = vmatmul.mubr.f32.gmra.mxu0 %v1406
  %v1605 = vpop.f32.mrf.mxu0
  %v1606 = vadd.f32 %v1346, %v1605
  %v1607 = vpop.f32.mrf.mxu0
  %1608 = vmatprep.mubr.f32.mxu0 0.0
  %1609 = vmatmul.mubr.f32.gmra.mxu0 %v1409
  %v1610 = vpop.f32.mrf.mxu0
  %v1611 = vadd.f32 %v1346, %v1610
  %v1612 = vpop.f32.mrf.mxu0
  %1613 = vmatprep.mubr.f32.mxu0 0.0
  %1614 = vmatmul.mubr.f32.gmra.mxu0 %v1412
  %v1615 = vpop.f32.mrf.mxu0
  %v1616 = vadd.f32 %v1346, %v1615
  %v1617 = vpop.f32.mrf.mxu0
  %1618 = vmatprep.mubr.f32.mxu0 0.0
  %1619 = vmatmul.mubr.f32.gmra.mxu0 %v1415
  %v1620 = vpop.f32.mrf.mxu0
  %v1621 = vadd.f32 %v1346, %v1620
  %v1622 = vpop.f32.mrf.mxu0
  %1623 = vmatprep.mubr.f32.mxu0 0.0
  %1624 = vmatmul.mubr.f32.gmra.mxu0 %v1418
  %v1625 = vpop.f32.mrf.mxu0
  %v1626 = vadd.f32 %v1346, %v1625
  %v1627 = vpop.f32.mrf.mxu0
  %1628 = vmatprep.mubr.f32.mxu0 0.0
  %1629 = vmatmul.mubr.f32.gmra.mxu0 %v1421
  %v1630 = vpop.f32.mrf.mxu0
  %v1631 = vadd.f32 %v1346, %v1630
  %v1632 = vpop.f32.mrf.mxu0
  %1633 = vmatprep.mubr.f32.mxu0 0.0
  %1634 = vmatmul.mubr.f32.gmra.mxu0 %v1424
  %v1635 = vpop.f32.mrf.mxu0
  %v1636 = vadd.f32 %v1346, %v1635
  %v1637 = vpop.f32.mrf.mxu0
  %1638 = vmatprep.mubr.f32.mxu0 0.0
  %1639 = vmatmul.mubr.f32.gmra.mxu0 %v1427
  %v1640 = vpop.f32.mrf.mxu0
  %v1641 = vadd.f32 %v1346, %v1640
  %v1642 = vpop.f32.mrf.mxu0
  %1643 = vmatprep.mubr.f32.mxu0 0.0
  %1644 = vmatmul.mubr.f32.gmra.mxu0 %v1430
  %v1645 = vpop.f32.mrf.mxu0
  %v1646 = vadd.f32 %v1346, %v1645
  %v1647 = vpop.f32.mrf.mxu0
  %1648 = vmatprep.mubr.f32.mxu0 0.0
  %1649 = vmatmul.mubr.f32.gmra.mxu0 %v1433
  %v1650 = vpop.f32.mrf.mxu0
  %v1651 = vadd.f32 %v1346, %v1650
  %v1652 = vpop.f32.mrf.mxu0
  %1653 = vmatprep.mubr.f32.mxu0 0.0
  %1654 = vmatmul.mubr.f32.gmra.mxu0 %v1436
  %v1655 = vpop.f32.mrf.mxu0
  %v1656 = vadd.f32 %v1346, %v1655
  %v1657 = vpop.f32.mrf.mxu0
  %1658 = vmatprep.mubr.f32.mxu0 0.0
  %1659 = vmatmul.mubr.f32.gmra.mxu0 %v1439
  %v1660 = vpop.f32.mrf.mxu0
  %v1661 = vadd.f32 %v1346, %v1660
  %v1662 = vpop.f32.mrf.mxu0
  %1663 = vmatprep.mubr.f32.mxu0 0.0
  %1664 = vmatmul.mubr.f32.gmra.mxu0 %v1442
  %v1665 = vpop.f32.mrf.mxu0
  %v1666 = vadd.f32 %v1346, %v1665
  %v1667 = vpop.f32.mrf.mxu0
  %1668 = vdwg.mxu0
  %vm1669 = vcmp.gt.f32.partialorder %v1511, 0.0
  %vm1670 = vcmp.gt.f32.partialorder %v1516, 0.0
  %vm1671 = vcmp.gt.f32.partialorder %v1521, 0.0
  %vm1672 = vcmp.gt.f32.partialorder %v1526, 0.0
  %vm1673 = vcmp.gt.f32.partialorder %v1531, 0.0
  %vm1674 = vcmp.gt.f32.partialorder %v1536, 0.0
  %vm1675 = vcmp.gt.f32.partialorder %v1541, 0.0
  %vm1676 = vcmp.gt.f32.partialorder %v1546, 0.0
  %vm1677 = vcmp.gt.f32.partialorder %v1551, 0.0
  %vm1678 = vcmp.gt.f32.partialorder %v1556, 0.0
  %vm1679 = vcmp.gt.f32.partialorder %v1561, 0.0
  %vm1680 = vcmp.gt.f32.partialorder %v1566, 0.0
  %vm1681 = vcmp.gt.f32.partialorder %v1571, 0.0
  %vm1682 = vcmp.gt.f32.partialorder %v1576, 0.0
  %vm1683 = vcmp.gt.f32.partialorder %v1581, 0.0
  %vm1684 = vcmp.gt.f32.partialorder %v1586, 0.0
  %vm1685 = vcmp.gt.f32.partialorder %v1591, 0.0
  %vm1686 = vcmp.gt.f32.partialorder %v1596, 0.0
  %vm1687 = vcmp.gt.f32.partialorder %v1601, 0.0
  %vm1688 = vcmp.gt.f32.partialorder %v1606, 0.0
  %vm1689 = vcmp.gt.f32.partialorder %v1611, 0.0
  %vm1690 = vcmp.gt.f32.partialorder %v1616, 0.0
  %vm1691 = vcmp.gt.f32.partialorder %v1621, 0.0
  %vm1692 = vcmp.gt.f32.partialorder %v1626, 0.0
  %vm1693 = vcmp.gt.f32.partialorder %v1631, 0.0
  %vm1694 = vcmp.gt.f32.partialorder %v1636, 0.0
  %vm1695 = vcmp.gt.f32.partialorder %v1641, 0.0
  %vm1696 = vcmp.gt.f32.partialorder %v1646, 0.0
  %vm1697 = vcmp.gt.f32.partialorder %v1651, 0.0
  %vm1698 = vcmp.gt.f32.partialorder %v1656, 0.0
  %vm1699 = vcmp.gt.f32.partialorder %v1661, 0.0
  %vm1700 = vcmp.gt.f32.partialorder %v1666, 0.0
  %v1701 = vmul.f32 %v1511, 0.2
  %v1702 = vmul.f32 %v1516, 0.2
  %v1703 = vmul.f32 %v1521, 0.2
  %v1704 = vmul.f32 %v1526, 0.2
  %v1705 = vmul.f32 %v1531, 0.2
  %v1706 = vmul.f32 %v1536, 0.2
  %v1707 = vmul.f32 %v1541, 0.2
  %v1708 = vmul.f32 %v1546, 0.2
  %v1709 = vmul.f32 %v1551, 0.2
  %v1710 = vmul.f32 %v1556, 0.2
  %v1711 = vmul.f32 %v1561, 0.2
  %v1712 = vmul.f32 %v1566, 0.2
  %v1713 = vmul.f32 %v1571, 0.2
  %v1714 = vmul.f32 %v1576, 0.2
  %v1715 = vmul.f32 %v1581, 0.2
  %v1716 = vmul.f32 %v1586, 0.2
  %v1717 = vmul.f32 %v1591, 0.2
  %v1718 = vmul.f32 %v1596, 0.2
  %v1719 = vmul.f32 %v1601, 0.2
  %v1720 = vmul.f32 %v1606, 0.2
  %v1721 = vmul.f32 %v1611, 0.2
  %v1722 = vmul.f32 %v1616, 0.2
  %v1723 = vmul.f32 %v1621, 0.2
  %v1724 = vmul.f32 %v1626, 0.2
  %v1725 = vmul.f32 %v1631, 0.2
  %v1726 = vmul.f32 %v1636, 0.2
  %v1727 = vmul.f32 %v1641, 0.2
  %v1728 = vmul.f32 %v1646, 0.2
  %v1729 = vmul.f32 %v1651, 0.2
  %v1730 = vmul.f32 %v1656, 0.2
  %v1731 = vmul.f32 %v1661, 0.2
  %v1732 = vmul.f32 %v1666, 0.2
  %v1733 = vsel %vm1669, %v1511, %v1701
  %v1734 = vsel %vm1670, %v1516, %v1702
  %v1735 = vsel %vm1671, %v1521, %v1703
  %v1736 = vsel %vm1672, %v1526, %v1704
  %v1737 = vsel %vm1673, %v1531, %v1705
  %v1738 = vsel %vm1674, %v1536, %v1706
  %v1739 = vsel %vm1675, %v1541, %v1707
  %v1740 = vsel %vm1676, %v1546, %v1708
  %v1741 = vsel %vm1677, %v1551, %v1709
  %v1742 = vsel %vm1678, %v1556, %v1710
  %v1743 = vsel %vm1679, %v1561, %v1711
  %v1744 = vsel %vm1680, %v1566, %v1712
  %v1745 = vsel %vm1681, %v1571, %v1713
  %v1746 = vsel %vm1682, %v1576, %v1714
  %v1747 = vsel %vm1683, %v1581, %v1715
  %v1748 = vsel %vm1684, %v1586, %v1716
  %v1749 = vsel %vm1685, %v1591, %v1717
  %v1750 = vsel %vm1686, %v1596, %v1718
  %v1751 = vsel %vm1687, %v1601, %v1719
  %v1752 = vsel %vm1688, %v1606, %v1720
  %v1753 = vsel %vm1689, %v1611, %v1721
  %v1754 = vsel %vm1690, %v1616, %v1722
  %v1755 = vsel %vm1691, %v1621, %v1723
  %v1756 = vsel %vm1692, %v1626, %v1724
  %v1757 = vsel %vm1693, %v1631, %v1725
  %v1758 = vsel %vm1694, %v1636, %v1726
  %v1759 = vsel %vm1695, %v1641, %v1727
  %v1760 = vsel %vm1696, %v1646, %v1728
  %v1761 = vsel %vm1697, %v1651, %v1729
  %v1762 = vsel %vm1698, %v1656, %v1730
  %v1763 = vsel %vm1699, %v1661, %v1731
  %v1764 = vsel %vm1700, %v1666, %v1732
  %s1765 = scalar_lea.vmem %s1, 128
  %v1766 = vld [vmem:[%s1765] sm:$0xff]
  %v1767 = vld [vmem:[%s1765 + $0x8] sm:$0xff]
  %v1768 = vld [vmem:[%s1765 + $0x10] sm:$0xff]
  %v1769 = vld [vmem:[%s1765 + $0x18] sm:$0xff]
  %s1770 = scalar_lea.vmem %s2, 4
  %v1771 = vld [vmem:[%s1770] sm:$0x1]
  %v1773 = vlaneseq
  %v1774 = vshrl.u32 %v1773, 7
  %v1775 = vsub.s32 0, %v1774
  %v1776 = vrot.slane %v1771, %v1775
  %v1779 = vsel %vm57, %v1733, 0
  %v1782 = vsel %vm57, %v1734, 0
  %v1785 = vsel %vm57, %v1735, 0
  %v1788 = vsel %vm57, %v1736, 0
  %v1791 = vsel %vm57, %v1737, 0
  %v1794 = vsel %vm57, %v1738, 0
  %v1797 = vsel %vm57, %v1739, 0
  %v1800 = vsel %vm57, %v1740, 0
  %v1803 = vsel %vm57, %v1741, 0
  %v1806 = vsel %vm57, %v1742, 0
  %v1809 = vsel %vm57, %v1743, 0
  %v1812 = vsel %vm57, %v1744, 0
  %v1815 = vsel %vm57, %v1745, 0
  %v1818 = vsel %vm57, %v1746, 0
  %v1821 = vsel %vm57, %v1747, 0
  %v1824 = vsel %vm57, %v1748, 0
  %v1827 = vsel %vm57, %v1749, 0
  %v1830 = vsel %vm57, %v1750, 0
  %v1833 = vsel %vm57, %v1751, 0
  %v1836 = vsel %vm57, %v1752, 0
  %v1839 = vsel %vm57, %v1753, 0
  %v1842 = vsel %vm57, %v1754, 0
  %v1845 = vsel %vm57, %v1755, 0
  %v1848 = vsel %vm57, %v1756, 0
  %v1851 = vsel %vm57, %v1757, 0
  %v1854 = vsel %vm57, %v1758, 0
  %v1857 = vsel %vm57, %v1759, 0
  %v1860 = vsel %vm57, %v1760, 0
  %v1863 = vsel %vm57, %v1761, 0
  %v1866 = vsel %vm57, %v1762, 0
  %v1869 = vsel %vm57, %v1763, 0
  %v1872 = vsel %vm57, %v1764, 0
  %1874 = vmatprep.subr.mxu0 0.0
  %1875 = vmatpush1.msra.mxu0 0.0
  %1876 = vmatprep.subr.mxu0 0.0
  %1877 = vmatpush1.msra.mxu0 0.0
  %1878 = vmatprep.subr.mxu0 0.0
  %1879 = vmatpush1.msra.mxu0 0.0
  %1880 = vmatprep.subr.mxu0 0.0
  %1881 = vmatpush1.msra.mxu0 0.0
  %1882 = vmatprep.subr.mxu0 0.0
  %1883 = vmatpush1.msra.mxu0 0.0
  %1884 = vmatprep.subr.mxu0 0.0
  %1885 = vmatpush1.msra.mxu0 0.0
  %1886 = vmatprep.subr.mxu0 0.0
  %1887 = vmatpush1.msra.mxu0 0.0
  %1888 = vmatprep.subr.mxu0 0.0
  %1889 = vmatpush1.msra.mxu0 0.0
  %1890 = vmatprep.subr.mxu0 0.0
  %1891 = vmatpush1.msra.mxu0 0.0
  %1892 = vmatprep.subr.mxu0 0.0
  %1893 = vmatpush1.msra.mxu0 0.0
  %1894 = vmatprep.subr.mxu0 0.0
  %1895 = vmatpush1.msra.mxu0 0.0
  %1896 = vmatprep.subr.mxu0 0.0
  %1897 = vmatpush1.msra.mxu0 0.0
  %1898 = vmatprep.subr.mxu0 0.0
  %1899 = vmatpush1.msra.mxu0 %v1769
  %1900 = vmatprep.subr.mxu0 0.0
  %1901 = vmatpush1.msra.mxu0 %v1768
  %1902 = vmatprep.subr.mxu0 0.0
  %1903 = vmatpush1.msra.mxu0 %v1767
  %1904 = vmatprep.subr.mxu0 0.0
  %1905 = vmatpush1.msra.mxu0 %v1766
  %1906 = vmatprep.subr.mxu0 0.0
  %1907 = vmatpush2.msra.mxu0 0.0
  %1908 = vmatprep.subr.mxu0 0.0
  %1909 = vmatpush2.msra.mxu0 0.0
  %1910 = vmatprep.subr.mxu0 0.0
  %1911 = vmatpush2.msra.mxu0 0.0
  %1912 = vmatprep.subr.mxu0 0.0
  %1913 = vmatpush2.msra.mxu0 0.0
  %1914 = vmatprep.subr.mxu0 0.0
  %1915 = vmatpush2.msra.mxu0 0.0
  %1916 = vmatprep.subr.mxu0 0.0
  %1917 = vmatpush2.msra.mxu0 0.0
  %1918 = vmatprep.subr.mxu0 0.0
  %1919 = vmatpush2.msra.mxu0 0.0
  %1920 = vmatprep.subr.mxu0 0.0
  %1921 = vmatpush2.msra.mxu0 0.0
  %1922 = vmatprep.subr.mxu0 0.0
  %1923 = vmatpush2.msra.mxu0 0.0
  %1924 = vmatprep.subr.mxu0 0.0
  %1925 = vmatpush2.msra.mxu0 0.0
  %1926 = vmatprep.subr.mxu0 0.0
  %1927 = vmatpush2.msra.mxu0 0.0
  %1928 = vmatprep.subr.mxu0 0.0
  %1929 = vmatpush2.msra.mxu0 0.0
  %1930 = vmatprep.subr.mxu0 0.0
  %1931 = vmatpush2.msra.mxu0 0.0
  %1932 = vmatprep.subr.mxu0 0.0
  %1933 = vmatpush2.msra.mxu0 0.0
  %1934 = vmatprep.subr.mxu0 0.0
  %1935 = vmatpush2.msra.mxu0 0.0
  %1936 = vmatprep.subr.mxu0 0.0
  %1937 = vmatpush2.msra.mxu0 0.0
  %1938 = vmatprep.mubr.f32.mxu0 0.0
  %1939 = vmatmul.mubr.f32.gmra.mxu0 %v1779
  %v1940 = vpop.f32.mrf.mxu0
  %v1941 = vadd.f32 %v1776, %v1940
  %v1942 = vpop.f32.mrf.mxu0
  %1943 = vmatprep.mubr.f32.mxu0 0.0
  %1944 = vmatmul.mubr.f32.gmra.mxu0 %v1782
  %v1945 = vpop.f32.mrf.mxu0
  %v1946 = vadd.f32 %v1776, %v1945
  %v1947 = vpop.f32.mrf.mxu0
  %1948 = vmatprep.mubr.f32.mxu0 0.0
  %1949 = vmatmul.mubr.f32.gmra.mxu0 %v1785
  %v1950 = vpop.f32.mrf.mxu0
  %v1951 = vadd.f32 %v1776, %v1950
  %v1952 = vpop.f32.mrf.mxu0
  %1953 = vmatprep.mubr.f32.mxu0 0.0
  %1954 = vmatmul.mubr.f32.gmra.mxu0 %v1788
  %v1955 = vpop.f32.mrf.mxu0
  %v1956 = vadd.f32 %v1776, %v1955
  %v1957 = vpop.f32.mrf.mxu0
  %1958 = vmatprep.mubr.f32.mxu0 0.0
  %1959 = vmatmul.mubr.f32.gmra.mxu0 %v1791
  %v1960 = vpop.f32.mrf.mxu0
  %v1961 = vadd.f32 %v1776, %v1960
  %v1962 = vpop.f32.mrf.mxu0
  %1963 = vmatprep.mubr.f32.mxu0 0.0
  %1964 = vmatmul.mubr.f32.gmra.mxu0 %v1794
  %v1965 = vpop.f32.mrf.mxu0
  %v1966 = vadd.f32 %v1776, %v1965
  %v1967 = vpop.f32.mrf.mxu0
  %1968 = vmatprep.mubr.f32.mxu0 0.0
  %1969 = vmatmul.mubr.f32.gmra.mxu0 %v1797
  %v1970 = vpop.f32.mrf.mxu0
  %v1971 = vadd.f32 %v1776, %v1970
  %v1972 = vpop.f32.mrf.mxu0
  %1973 = vmatprep.mubr.f32.mxu0 0.0
  %1974 = vmatmul.mubr.f32.gmra.mxu0 %v1800
  %v1975 = vpop.f32.mrf.mxu0
  %v1976 = vadd.f32 %v1776, %v1975
  %v1977 = vpop.f32.mrf.mxu0
  %1978 = vmatprep.mubr.f32.mxu0 0.0
  %1979 = vmatmul.mubr.f32.gmra.mxu0 %v1803
  %v1980 = vpop.f32.mrf.mxu0
  %v1981 = vadd.f32 %v1776, %v1980
  %v1982 = vpop.f32.mrf.mxu0
  %1983 = vmatprep.mubr.f32.mxu0 0.0
  %1984 = vmatmul.mubr.f32.gmra.mxu0 %v1806
  %v1985 = vpop.f32.mrf.mxu0
  %v1986 = vadd.f32 %v1776, %v1985
  %v1987 = vpop.f32.mrf.mxu0
  %1988 = vmatprep.mubr.f32.mxu0 0.0
  %1989 = vmatmul.mubr.f32.gmra.mxu0 %v1809
  %v1990 = vpop.f32.mrf.mxu0
  %v1991 = vadd.f32 %v1776, %v1990
  %v1992 = vpop.f32.mrf.mxu0
  %1993 = vmatprep.mubr.f32.mxu0 0.0
  %1994 = vmatmul.mubr.f32.gmra.mxu0 %v1812
  %v1995 = vpop.f32.mrf.mxu0
  %v1996 = vadd.f32 %v1776, %v1995
  %v1997 = vpop.f32.mrf.mxu0
  %1998 = vmatprep.mubr.f32.mxu0 0.0
  %1999 = vmatmul.mubr.f32.gmra.mxu0 %v1815
  %v2000 = vpop.f32.mrf.mxu0
  %v2001 = vadd.f32 %v1776, %v2000
  %v2002 = vpop.f32.mrf.mxu0
  %2003 = vmatprep.mubr.f32.mxu0 0.0
  %2004 = vmatmul.mubr.f32.gmra.mxu0 %v1818
  %v2005 = vpop.f32.mrf.mxu0
  %v2006 = vadd.f32 %v1776, %v2005
  %v2007 = vpop.f32.mrf.mxu0
  %2008 = vmatprep.mubr.f32.mxu0 0.0
  %2009 = vmatmul.mubr.f32.gmra.mxu0 %v1821
  %v2010 = vpop.f32.mrf.mxu0
  %v2011 = vadd.f32 %v1776, %v2010
  %v2012 = vpop.f32.mrf.mxu0
  %2013 = vmatprep.mubr.f32.mxu0 0.0
  %2014 = vmatmul.mubr.f32.gmra.mxu0 %v1824
  %v2015 = vpop.f32.mrf.mxu0
  %v2016 = vadd.f32 %v1776, %v2015
  %v2017 = vpop.f32.mrf.mxu0
  %2018 = vmatprep.mubr.f32.mxu0 0.0
  %2019 = vmatmul.mubr.f32.gmra.mxu0 %v1827
  %v2020 = vpop.f32.mrf.mxu0
  %v2021 = vadd.f32 %v1776, %v2020
  %v2022 = vpop.f32.mrf.mxu0
  %2023 = vmatprep.mubr.f32.mxu0 0.0
  %2024 = vmatmul.mubr.f32.gmra.mxu0 %v1830
  %v2025 = vpop.f32.mrf.mxu0
  %v2026 = vadd.f32 %v1776, %v2025
  %v2027 = vpop.f32.mrf.mxu0
  %2028 = vmatprep.mubr.f32.mxu0 0.0
  %2029 = vmatmul.mubr.f32.gmra.mxu0 %v1833
  %v2030 = vpop.f32.mrf.mxu0
  %v2031 = vadd.f32 %v1776, %v2030
  %v2032 = vpop.f32.mrf.mxu0
  %2033 = vmatprep.mubr.f32.mxu0 0.0
  %2034 = vmatmul.mubr.f32.gmra.mxu0 %v1836
  %v2035 = vpop.f32.mrf.mxu0
  %v2036 = vadd.f32 %v1776, %v2035
  %v2037 = vpop.f32.mrf.mxu0
  %2038 = vmatprep.mubr.f32.mxu0 0.0
  %2039 = vmatmul.mubr.f32.gmra.mxu0 %v1839
  %v2040 = vpop.f32.mrf.mxu0
  %v2041 = vadd.f32 %v1776, %v2040
  %v2042 = vpop.f32.mrf.mxu0
  %2043 = vmatprep.mubr.f32.mxu0 0.0
  %2044 = vmatmul.mubr.f32.gmra.mxu0 %v1842
  %v2045 = vpop.f32.mrf.mxu0
  %v2046 = vadd.f32 %v1776, %v2045
  %v2047 = vpop.f32.mrf.mxu0
  %2048 = vmatprep.mubr.f32.mxu0 0.0
  %2049 = vmatmul.mubr.f32.gmra.mxu0 %v1845
  %v2050 = vpop.f32.mrf.mxu0
  %v2051 = vadd.f32 %v1776, %v2050
  %v2052 = vpop.f32.mrf.mxu0
  %2053 = vmatprep.mubr.f32.mxu0 0.0
  %2054 = vmatmul.mubr.f32.gmra.mxu0 %v1848
  %v2055 = vpop.f32.mrf.mxu0
  %v2056 = vadd.f32 %v1776, %v2055
  %v2057 = vpop.f32.mrf.mxu0
  %2058 = vmatprep.mubr.f32.mxu0 0.0
  %2059 = vmatmul.mubr.f32.gmra.mxu0 %v1851
  %v2060 = vpop.f32.mrf.mxu0
  %v2061 = vadd.f32 %v1776, %v2060
  %v2062 = vpop.f32.mrf.mxu0
  %2063 = vmatprep.mubr.f32.mxu0 0.0
  %2064 = vmatmul.mubr.f32.gmra.mxu0 %v1854
  %v2065 = vpop.f32.mrf.mxu0
  %v2066 = vadd.f32 %v1776, %v2065
  %v2067 = vpop.f32.mrf.mxu0
  %2068 = vmatprep.mubr.f32.mxu0 0.0
  %2069 = vmatmul.mubr.f32.gmra.mxu0 %v1857
  %v2070 = vpop.f32.mrf.mxu0
  %v2071 = vadd.f32 %v1776, %v2070
  %v2072 = vpop.f32.mrf.mxu0
  %2073 = vmatprep.mubr.f32.mxu0 0.0
  %2074 = vmatmul.mubr.f32.gmra.mxu0 %v1860
  %v2075 = vpop.f32.mrf.mxu0
  %v2076 = vadd.f32 %v1776, %v2075
  %v2077 = vpop.f32.mrf.mxu0
  %2078 = vmatprep.mubr.f32.mxu0 0.0
  %2079 = vmatmul.mubr.f32.gmra.mxu0 %v1863
  %v2080 = vpop.f32.mrf.mxu0
  %v2081 = vadd.f32 %v1776, %v2080
  %v2082 = vpop.f32.mrf.mxu0
  %2083 = vmatprep.mubr.f32.mxu0 0.0
  %2084 = vmatmul.mubr.f32.gmra.mxu0 %v1866
  %v2085 = vpop.f32.mrf.mxu0
  %v2086 = vadd.f32 %v1776, %v2085
  %v2087 = vpop.f32.mrf.mxu0
  %2088 = vmatprep.mubr.f32.mxu0 0.0
  %2089 = vmatmul.mubr.f32.gmra.mxu0 %v1869
  %v2090 = vpop.f32.mrf.mxu0
  %v2091 = vadd.f32 %v1776, %v2090
  %v2092 = vpop.f32.mrf.mxu0
  %2093 = vmatprep.mubr.f32.mxu0 0.0
  %2094 = vmatmul.mubr.f32.gmra.mxu0 %v1872
  %v2095 = vpop.f32.mrf.mxu0
  %v2096 = vadd.f32 %v1776, %v2095
  %v2097 = vpop.f32.mrf.mxu0
  %2098 = vdwg.mxu0
  %vm2099 = vcmask 15360
  %2100 = vst.msk [vmem:[%s3] sm:$0xff] %vm2099, %v1941
  %2101 = vst.msk [vmem:[%s3 + $0x8] sm:$0xff] %vm2099, %v1946
  %2102 = vst.msk [vmem:[%s3 + $0x10] sm:$0xff] %vm2099, %v1951
  %2103 = vst.msk [vmem:[%s3 + $0x18] sm:$0xff] %vm2099, %v1956
  %2104 = vst.msk [vmem:[%s3 + $0x20] sm:$0xff] %vm2099, %v1961
  %2105 = vst.msk [vmem:[%s3 + $0x28] sm:$0xff] %vm2099, %v1966
  %2106 = vst.msk [vmem:[%s3 + $0x30] sm:$0xff] %vm2099, %v1971
  %2107 = vst.msk [vmem:[%s3 + $0x38] sm:$0xff] %vm2099, %v1976
  %2108 = vst.msk [vmem:[%s3 + $0x40] sm:$0xff] %vm2099, %v1981
  %2109 = vst.msk [vmem:[%s3 + $0x48] sm:$0xff] %vm2099, %v1986
  %2110 = vst.msk [vmem:[%s3 + $0x50] sm:$0xff] %vm2099, %v1991
  %2111 = vst.msk [vmem:[%s3 + $0x58] sm:$0xff] %vm2099, %v1996
  %2112 = vst.msk [vmem:[%s3 + $0x60] sm:$0xff] %vm2099, %v2001
  %2113 = vst.msk [vmem:[%s3 + $0x68] sm:$0xff] %vm2099, %v2006
  %2114 = vst.msk [vmem:[%s3 + $0x70] sm:$0xff] %vm2099, %v2011
  %2115 = vst.msk [vmem:[%s3 + $0x78] sm:$0xff] %vm2099, %v2016
  %2116 = vst.msk [vmem:[%s3 + $0x80] sm:$0xff] %vm2099, %v2021
  %2117 = vst.msk [vmem:[%s3 + $0x88] sm:$0xff] %vm2099, %v2026
  %2118 = vst.msk [vmem:[%s3 + $0x90] sm:$0xff] %vm2099, %v2031
  %2119 = vst.msk [vmem:[%s3 + $0x98] sm:$0xff] %vm2099, %v2036
  %2120 = vst.msk [vmem:[%s3 + $0xa0] sm:$0xff] %vm2099, %v2041
  %2121 = vst.msk [vmem:[%s3 + $0xa8] sm:$0xff] %vm2099, %v2046
  %2122 = vst.msk [vmem:[%s3 + $0xb0] sm:$0xff] %vm2099, %v2051
  %2123 = vst.msk [vmem:[%s3 + $0xb8] sm:$0xff] %vm2099, %v2056
  %2124 = vst.msk [vmem:[%s3 + $0xc0] sm:$0xff] %vm2099, %v2061
  %2125 = vst.msk [vmem:[%s3 + $0xc8] sm:$0xff] %vm2099, %v2066
  %2126 = vst.msk [vmem:[%s3 + $0xd0] sm:$0xff] %vm2099, %v2071
  %2127 = vst.msk [vmem:[%s3 + $0xd8] sm:$0xff] %vm2099, %v2076
  %2128 = vst.msk [vmem:[%s3 + $0xe0] sm:$0xff] %vm2099, %v2081
  %2129 = vst.msk [vmem:[%s3 + $0xe8] sm:$0xff] %vm2099, %v2086
  %2130 = vst.msk [vmem:[%s3 + $0xf0] sm:$0xff] %vm2099, %v2091
  %2131 = vst.msk [vmem:[%s3 + $0xf8] sm:$0xff] %vm2099, %v2096
  // Predicated region
  $region14: #{tpu_custom_call.1} parent=0 // pred_check
    _
  $region15: #{tpu_custom_call.1} parent=0 // pred_check_branch
    %2133 = sbr.rel (0) target = $region17
  $region16: #{tpu_custom_call.1} parent=0 // pred_region
    _
  $region17: #{tpu_custom_call.1} parent=0 // pred_fallthru
    _
  // Predicated region
  $region18: #{tpu_custom_call.1} parent=0 // pred_check
    _
  $region19: #{tpu_custom_call.1} parent=0 // pred_check_branch
    %2135 = sbr.rel (0) target = $region21
  $region20: #{tpu_custom_call.1} parent=0 // pred_region
    _
  $region21: #{tpu_custom_call.1} parent=0 // pred_fallthru
    _

</llo_original>
